<compile_context>
chip_gen: v5e
topology: v5e:2x2
jax: 0.10.0
libtpu: 0.0.40
codegen_flags: <defaults>
</compile_context>

<pallas_src>
import functools

import jax
import jax.numpy as jnp
from jax.experimental import pallas as pl
from jax.experimental.pallas import tpu as pltpu


D_IN = 784          # 28*28 flattened features
H1 = 256
H2 = 128


# ----------------------------------------------------------------------------
# Kernel: one (TB, 784) batch tile through all four fused layers.
# Weights/biases are full VMEM-resident blocks (constant index maps).
# ----------------------------------------------------------------------------
def _autoencoder_lin_kernel(x_ref,
                            w1_ref, b1_ref,
                            w2_ref, b2_ref,
                            w3_ref, b3_ref,
                            w4_ref, b4_ref,
                            o_ref):
    # x_ref: (TB, 784) f32; weights bf16 (in, out); biases f32 (1, out);
    # o_ref: (TB, 784) bf16.
    x = x_ref[...].astype(jnp.bfloat16)                       # cast in VMEM (VPU)

    h = jnp.dot(x, w1_ref[...],
                preferred_element_type=jnp.float32) + b1_ref[...]
    h = jnp.maximum(h, 0.0).astype(jnp.bfloat16)

    h = jnp.dot(h, w2_ref[...],
                preferred_element_type=jnp.float32) + b2_ref[...]
    h = jnp.maximum(h, 0.0).astype(jnp.bfloat16)              # latent (TB, 128)

    h = jnp.dot(h, w3_ref[...],
                preferred_element_type=jnp.float32) + b3_ref[...]
    h = jnp.maximum(h, 0.0).astype(jnp.bfloat16)

    y = jnp.dot(h, w4_ref[...],
                preferred_element_type=jnp.float32) + b4_ref[...]
    o_ref[...] = jnp.maximum(y, 0.0).astype(o_ref.dtype)      # bf16 store


# ----------------------------------------------------------------------------
# Batch-tile selection: minimise padding, amortise per-grid-step overhead,
# keep >=2 grid steps (for v7x's 2 TCs) whenever tiles can stay >= 256 rows.
# ----------------------------------------------------------------------------
def _choose_block_b(batch, max_tb=512):
    nb = -(-batch // max_tb)
    if nb < 2 and batch >= 2 * 256:
        nb = 2
    per_tile = -(-batch // nb)
    return -(-per_tile // 16) * 16      # multiple of 16 (bf16 sublane packing)


# ----------------------------------------------------------------------------
# Wrapper: reshape NCHW -> (B, 784) (free), pad rows only if needed, run the
# gridded pallas_call, cast back to f32 at the end.
# ----------------------------------------------------------------------------
@functools.partial(jax.jit, static_argnames=("block_b",))
def autoencoder_lin_forward(x_nchw, packed_params, block_b=None):
    """x_nchw: (B, 1, 28, 28) float32.  Returns (B, 784) float32."""
    B = x_nchw.shape[0]
    x2d = x_nchw.reshape(B, -1).astype(jnp.float32)    # == x.view(-1, 784)
    assert x2d.shape[1] == D_IN

    if block_b is None:
        block_b = _choose_block_b(B)
    nb = -(-B // block_b)
    b_pad = nb * block_b
    if b_pad != B:                                     # small row-pad only
        x2d = jnp.pad(x2d, ((0, b_pad - B), (0, 0)))

    w1, b1, w2, b2, w3, b3, w4, b4 = packed_params

    def resident(shape):
        # Block index is constant across the grid -> stays in VMEM (no re-DMA).
        return pl.BlockSpec(shape, lambda i: (0, 0))

    grid_spec = pltpu.PrefetchScalarGridSpec(
        num_scalar_prefetch=0,
        grid=(nb,),
        in_specs=[
            pl.BlockSpec((block_b, D_IN), lambda i: (i, 0)),   # x tile (f32)
            resident((D_IN, H1)), resident((1, H1)),           # layer 1
            resident((H1, H2)),   resident((1, H2)),           # layer 2
            resident((H2, H1)),   resident((1, H1)),           # layer 3
            resident((H1, D_IN)), resident((1, D_IN)),         # layer 4
        ],
        out_specs=pl.BlockSpec((block_b, D_IN), lambda i: (i, 0)),
    )

    # Advisory cost estimate for XLA's scheduler.
    macs_per_row = D_IN * H1 + H1 * H2 + H2 * H1 + H1 * D_IN
    weight_bytes = 2 * macs_per_row + 4 * (H1 + H2 + H1 + D_IN)
    cost = pl.CostEstimate(
        flops=2 * macs_per_row * b_pad,
        transcendentals=0,
        bytes_accessed=weight_bytes + b_pad * D_IN * (4 + 2),   # f32 in, bf16 out
    )

    out = pl.pallas_call(
        _autoencoder_lin_kernel,
        out_shape=jax.ShapeDtypeStruct((b_pad, D_IN), jnp.bfloat16),
        grid_spec=grid_spec,
        compiler_params=pltpu.CompilerParams(
            dimension_semantics=("parallel",),
            vmem_limit_bytes=32 * 1024 * 1024,
        ),
        cost_estimate=cost,
    )(x2d, w1, b1, w2, b2, w3, b3, w4, b4)

    if b_pad != B:
        out = out[:B]
    return out.astype(jnp.float32)


# ----------------------------------------------------------------------------
# Deterministic parameter init mimicking nn.Linear's default
# (uniform(-1/sqrt(fan_in), 1/sqrt(fan_in)) for both weight and bias).
# Weights are generated as (in, out) == PyTorch W.T.
# ----------------------------------------------------------------------------
def init_params(key):
    def linear_init(k, fan_in, fan_out):
        kw, kb = jax.random.split(k)
        bound = 1.0 / jnp.sqrt(jnp.float32(fan_in))
        w = jax.random.uniform(kw, (fan_in, fan_out), jnp.float32, -bound, bound)
        b = jax.random.uniform(kb, (1, fan_out), jnp.float32, -bound, bound)
        return w, b

    k1, k2, k3, k4 = jax.random.split(key, 4)
    w1, b1 = linear_init(k1, D_IN, H1)    # encoder.layer1
    w2, b2 = linear_init(k2, H1, H2)      # encoder.layer2
    w3, b3 = linear_init(k3, H2, H1)      # decoder.layer1
    w4, b4 = linear_init(k4, H1, D_IN)    # decoder.layer2
    return (w1, b1, w2, b2, w3, b3, w4, b4)


def pack_params_for_kernel(params):
    """One-time cast of matmul weights to bf16 (no padding needed)."""
    w1, b1, w2, b2, w3, b3, w4, b4 = params
    return (w1.astype(jnp.bfloat16), b1,
            w2.astype(jnp.bfloat16), b2,
            w3.astype(jnp.bfloat16), b3,
            w4.astype(jnp.bfloat16), b4)


def reference_forward(x_nchw, params):
    """Pure-JAX reference with the same bf16-operand / f32-accumulate recipe,
    including the final bf16 rounding the kernel's output store applies."""
    w1, b1, w2, b2, w3, b3, w4, b4 = params

    def layer(h, w, b):
        y = jnp.dot(h.astype(jnp.bfloat16), w.astype(jnp.bfloat16),
                    preferred_element_type=jnp.float32) + b
        return jnp.maximum(y, 0.0)

    h = x_nchw.reshape(x_nchw.shape[0], -1).astype(jnp.float32)
    h = layer(h, w1, b1)
    h = layer(h, w2, b2)
    h = layer(h, w3, b3)
    y = layer(h, w4, b4)
    return y.astype(jnp.bfloat16).astype(jnp.float32)


if __name__ == "__main__":
    key = jax.random.PRNGKey(0)
    kx, kx2, kp = jax.random.split(key, 3)

    params = init_params(kp)
    packed = pack_params_for_kernel(params)

    # Small, module-consistent input: MNIST-like NCHW (batch=2, 1 channel, 28x28).
    x_small = jax.random.normal(kx, (2, 1, 28, 28), dtype=jnp.float32)
    y_small = jax.block_until_ready(autoencoder_lin_forward(x_small, packed))
    y_small_ref = reference_forward(x_small, params)
    assert y_small.shape == (2, D_IN)
    assert jnp.allclose(y_small, y_small_ref, atol=1e-2, rtol=1e-2), \
        "small-batch mismatch vs reference"

    # Larger, non-multiple-of-tile batch: exercises adaptive block_b + row pad.
    x_big = jax.random.normal(kx2, (300, 1, 28, 28), dtype=jnp.float32)
    y_big = jax.block_until_ready(autoencoder_lin_forward(x_big, packed))
    y_big_ref = reference_forward(x_big, params)
    assert y_big.shape == (300, D_IN)
    assert jnp.allclose(y_big, y_big_ref, atol=1e-2, rtol=1e-2), \
        "large-batch mismatch vs reference"

    print("KERNEL_OK")
</pallas_src>

<mosaic_0001>
module attributes {stable_mosaic.version = 11 : i64} {
  func.func @_autoencoder_lin_kernel(%arg0: i32, %arg1: memref<16x784xf32, #tpu.memory_space<vmem>>, %arg2: memref<784x256xbf16, #tpu.memory_space<vmem>>, %arg3: memref<1x256xf32, #tpu.memory_space<vmem>>, %arg4: memref<256x128xbf16, #tpu.memory_space<vmem>>, %arg5: memref<1x128xf32, #tpu.memory_space<vmem>>, %arg6: memref<128x256xbf16, #tpu.memory_space<vmem>>, %arg7: memref<1x256xf32, #tpu.memory_space<vmem>>, %arg8: memref<256x784xbf16, #tpu.memory_space<vmem>>, %arg9: memref<1x784xf32, #tpu.memory_space<vmem>>, %arg10: memref<16x784xbf16, #tpu.memory_space<vmem>>) attributes {dimension_semantics = [#tpu.dimension_semantics<parallel>], iteration_bounds = array<i64: 1>, scalar_prefetch = 0 : i64, scratch_operands = 0 : i64, tpu.core_type = #tpu.core_type<tc>, window_params = [{transform_indices = @transform_0, window_bounds = array<i64: 16, 784>}, {pipeline_mode = #tpu.pipeline_mode<synchronous>, transform_indices = @transform_1, window_bounds = array<i64: 784, 256>}, {pipeline_mode = #tpu.pipeline_mode<synchronous>, transform_indices = @transform_2, window_bounds = array<i64: 1, 256>}, {pipeline_mode = #tpu.pipeline_mode<synchronous>, transform_indices = @transform_3, window_bounds = array<i64: 256, 128>}, {pipeline_mode = #tpu.pipeline_mode<synchronous>, transform_indices = @transform_4, window_bounds = array<i64: 1, 128>}, {pipeline_mode = #tpu.pipeline_mode<synchronous>, transform_indices = @transform_5, window_bounds = array<i64: 128, 256>}, {pipeline_mode = #tpu.pipeline_mode<synchronous>, transform_indices = @transform_6, window_bounds = array<i64: 1, 256>}, {pipeline_mode = #tpu.pipeline_mode<synchronous>, transform_indices = @transform_7, window_bounds = array<i64: 256, 784>}, {pipeline_mode = #tpu.pipeline_mode<synchronous>, transform_indices = @transform_8, window_bounds = array<i64: 1, 784>}, {transform_indices = @transform_9, window_bounds = array<i64: 16, 784>}]} {
    %c0 = arith.constant 0 : index
    %c0_0 = arith.constant 0 : index
    %0 = vector.load %arg1[%c0, %c0_0] : memref<16x784xf32, #tpu.memory_space<vmem>>, vector<16x784xf32>
    %1 = arith.truncf %0 : vector<16x784xf32> to vector<16x784xbf16>
    %c0_1 = arith.constant 0 : index
    %c0_2 = arith.constant 0 : index
    %2 = vector.load %arg2[%c0_1, %c0_2] : memref<784x256xbf16, #tpu.memory_space<vmem>>, vector<784x256xbf16>
    %cst = arith.constant dense<0.000000e+00> : vector<16x256xf32>
    %3 = tpu.matmul %1, %2, %cst {dimension_numbers = #tpu.dot_dimension_numbers<[1], [0], [0], [1], [0, 0, 1, 1], [], []>} : vector<16x784xbf16>, vector<784x256xbf16>, vector<16x256xf32> -> vector<16x256xf32>
    %c0_3 = arith.constant 0 : index
    %c0_4 = arith.constant 0 : index
    %4 = vector.load %arg3[%c0_3, %c0_4] : memref<1x256xf32, #tpu.memory_space<vmem>>, vector<1x256xf32>
    %5 = vector.broadcast %4 : vector<1x256xf32> to vector<16x256xf32>
    %6 = arith.addf %3, %5 : vector<16x256xf32>
    %cst_5 = arith.constant 0.000000e+00 : f32
    %7 = vector.broadcast %cst_5 : f32 to vector<16x256xf32>
    %8 = arith.maximumf %6, %7 : vector<16x256xf32>
    %9 = arith.truncf %8 : vector<16x256xf32> to vector<16x256xbf16>
    %c0_6 = arith.constant 0 : index
    %c0_7 = arith.constant 0 : index
    %10 = vector.load %arg4[%c0_6, %c0_7] : memref<256x128xbf16, #tpu.memory_space<vmem>>, vector<256x128xbf16>
    %cst_8 = arith.constant dense<0.000000e+00> : vector<16x128xf32>
    %11 = tpu.matmul %9, %10, %cst_8 {dimension_numbers = #tpu.dot_dimension_numbers<[1], [0], [0], [1], [0, 0, 1, 1], [], []>} : vector<16x256xbf16>, vector<256x128xbf16>, vector<16x128xf32> -> vector<16x128xf32>
    %c0_9 = arith.constant 0 : index
    %c0_10 = arith.constant 0 : index
    %12 = vector.load %arg5[%c0_9, %c0_10] : memref<1x128xf32, #tpu.memory_space<vmem>>, vector<1x128xf32>
    %13 = vector.broadcast %12 : vector<1x128xf32> to vector<16x128xf32>
    %14 = arith.addf %11, %13 : vector<16x128xf32>
    %cst_11 = arith.constant 0.000000e+00 : f32
    %15 = vector.broadcast %cst_11 : f32 to vector<16x128xf32>
    %16 = arith.maximumf %14, %15 : vector<16x128xf32>
    %17 = arith.truncf %16 : vector<16x128xf32> to vector<16x128xbf16>
    %c0_12 = arith.constant 0 : index
    %c0_13 = arith.constant 0 : index
    %18 = vector.load %arg6[%c0_12, %c0_13] : memref<128x256xbf16, #tpu.memory_space<vmem>>, vector<128x256xbf16>
    %cst_14 = arith.constant dense<0.000000e+00> : vector<16x256xf32>
    %19 = tpu.matmul %17, %18, %cst_14 {dimension_numbers = #tpu.dot_dimension_numbers<[1], [0], [0], [1], [0, 0, 1, 1], [], []>} : vector<16x128xbf16>, vector<128x256xbf16>, vector<16x256xf32> -> vector<16x256xf32>
    %c0_15 = arith.constant 0 : index
    %c0_16 = arith.constant 0 : index
    %20 = vector.load %arg7[%c0_15, %c0_16] : memref<1x256xf32, #tpu.memory_space<vmem>>, vector<1x256xf32>
    %21 = vector.broadcast %20 : vector<1x256xf32> to vector<16x256xf32>
    %22 = arith.addf %19, %21 : vector<16x256xf32>
    %cst_17 = arith.constant 0.000000e+00 : f32
    %23 = vector.broadcast %cst_17 : f32 to vector<16x256xf32>
    %24 = arith.maximumf %22, %23 : vector<16x256xf32>
    %25 = arith.truncf %24 : vector<16x256xf32> to vector<16x256xbf16>
    %c0_18 = arith.constant 0 : index
    %c0_19 = arith.constant 0 : index
    %26 = vector.load %arg8[%c0_18, %c0_19] : memref<256x784xbf16, #tpu.memory_space<vmem>>, vector<256x784xbf16>
    %cst_20 = arith.constant dense<0.000000e+00> : vector<16x784xf32>
    %27 = tpu.matmul %25, %26, %cst_20 {dimension_numbers = #tpu.dot_dimension_numbers<[1], [0], [0], [1], [0, 0, 1, 1], [], []>} : vector<16x256xbf16>, vector<256x784xbf16>, vector<16x784xf32> -> vector<16x784xf32>
    %c0_21 = arith.constant 0 : index
    %c0_22 = arith.constant 0 : index
    %28 = vector.load %arg9[%c0_21, %c0_22] : memref<1x784xf32, #tpu.memory_space<vmem>>, vector<1x784xf32>
    %29 = vector.broadcast %28 : vector<1x784xf32> to vector<16x784xf32>
    %30 = arith.addf %27, %29 : vector<16x784xf32>
    %cst_23 = arith.constant 0.000000e+00 : f32
    %31 = vector.broadcast %cst_23 : f32 to vector<16x784xf32>
    %32 = arith.maximumf %30, %31 : vector<16x784xf32>
    %33 = arith.truncf %32 : vector<16x784xf32> to vector<16x784xbf16>
    %c0_24 = arith.constant 0 : index
    %c0_25 = arith.constant 0 : index
    %34 = vector.load %arg10[%c0_24, %c0_25] : memref<16x784xbf16, #tpu.memory_space<vmem>>, vector<16x784xbf16>
    tpu.vector_store %arg10[%c0_24, %c0_25], %33 {strides = array<i32>} : memref<16x784xbf16, #tpu.memory_space<vmem>>, vector<16x784xbf16>,
    return
  }
  func.func @transform_0(%arg0: i32) -> (i32, i32) {
    %c0_i32 = arith.constant 0 : i32
    %c0_i32_0 = arith.constant 0 : i32
    return %arg0, %c0_i32 : i32, i32
  }
  func.func @transform_1(%arg0: i32) -> (i32, i32) {
    %c0_i32 = arith.constant 0 : i32
    %c0_i32_0 = arith.constant 0 : i32
    %c0_i32_1 = arith.constant 0 : i32
    return %c0_i32, %c0_i32_0 : i32, i32
  }
  func.func @transform_2(%arg0: i32) -> (i32, i32) {
    %c0_i32 = arith.constant 0 : i32
    %c0_i32_0 = arith.constant 0 : i32
    %c0_i32_1 = arith.constant 0 : i32
    return %c0_i32, %c0_i32_0 : i32, i32
  }
  func.func @transform_3(%arg0: i32) -> (i32, i32) {
    %c0_i32 = arith.constant 0 : i32
    %c0_i32_0 = arith.constant 0 : i32
    %c0_i32_1 = arith.constant 0 : i32
    return %c0_i32, %c0_i32_0 : i32, i32
  }
  func.func @transform_4(%arg0: i32) -> (i32, i32) {
    %c0_i32 = arith.constant 0 : i32
    %c0_i32_0 = arith.constant 0 : i32
    %c0_i32_1 = arith.constant 0 : i32
    return %c0_i32, %c0_i32_0 : i32, i32
  }
  func.func @transform_5(%arg0: i32) -> (i32, i32) {
    %c0_i32 = arith.constant 0 : i32
    %c0_i32_0 = arith.constant 0 : i32
    %c0_i32_1 = arith.constant 0 : i32
    return %c0_i32, %c0_i32_0 : i32, i32
  }
  func.func @transform_6(%arg0: i32) -> (i32, i32) {
    %c0_i32 = arith.constant 0 : i32
    %c0_i32_0 = arith.constant 0 : i32
    %c0_i32_1 = arith.constant 0 : i32
    return %c0_i32, %c0_i32_0 : i32, i32
  }
  func.func @transform_7(%arg0: i32) -> (i32, i32) {
    %c0_i32 = arith.constant 0 : i32
    %c0_i32_0 = arith.constant 0 : i32
    %c0_i32_1 = arith.constant 0 : i32
    return %c0_i32, %c0_i32_0 : i32, i32
  }
  func.func @transform_8(%arg0: i32) -> (i32, i32) {
    %c0_i32 = arith.constant 0 : i32
    %c0_i32_0 = arith.constant 0 : i32
    %c0_i32_1 = arith.constant 0 : i32
    return %c0_i32, %c0_i32_0 : i32, i32
  }
  func.func @transform_9(%arg0: i32) -> (i32, i32) {
    %c0_i32 = arith.constant 0 : i32
    %c0_i32_0 = arith.constant 0 : i32
    return %arg0, %c0_i32 : i32, i32
  }
}

</mosaic_0001>

<llo_original>
// kernel: autoencoder_lin_forward.1
$region0: #{autoencoder_lin_forward.1}
  #allocation0 [shape = 'u32[]', space=smem, size = 0x4, offset = 0x4, fixed_abs, tag = 'smem constant byte address 0x4 - core index']
  #allocation1 [shape = 'u32[72,128]{1,0:T(1,128)}', space=vmem, size = 0x9000, scoped, tag = 'internal scratch']
  %s0 = inlined_call_operand.vmem [shape: f32[16,784], index: 0, kind: input, shape index: {}]
  %s1 = inlined_call_operand.vmem [shape: bf16[784,256], index: 1, kind: input, shape index: {}]
  %s2 = inlined_call_operand.vmem [shape: f32[1,256], index: 2, kind: input, shape index: {}]
  %s3 = inlined_call_operand.vmem [shape: bf16[256,128], index: 3, kind: input, shape index: {}]
  %s4 = inlined_call_operand.vmem [shape: f32[1,128], index: 4, kind: input, shape index: {}]
  %s5 = inlined_call_operand.vmem [shape: bf16[128,256], index: 5, kind: input, shape index: {}]
  %s6 = inlined_call_operand.vmem [shape: f32[1,256], index: 6, kind: input, shape index: {}]
  %s7 = inlined_call_operand.vmem [shape: bf16[256,784], index: 7, kind: input, shape index: {}]
  %s8 = inlined_call_operand.vmem [shape: f32[1,784], index: 8, kind: input, shape index: {}]
  %s9 = inlined_call_operand.vmem [shape: bf16[16,784], index: 9, kind: output, shape index: {}]
  %s10 = sld [smem:[#allocation0]]
  $region46: #{autoencoder_lin_forward.1} parent=0
    _
  %s12 = ssub.s32 1, %s10
  %s13 = scalar_select 0, %s12, %s10
  // Predicated region
  $region2: #{autoencoder_lin_forward.1} parent=0 // pred_check
    _
  $region3: #{autoencoder_lin_forward.1} parent=0 // pred_check_branch
    %15 = sbr.rel (0) target = $region5
  $region4: #{autoencoder_lin_forward.1} parent=0 // pred_region
    _
  $region5: #{autoencoder_lin_forward.1} parent=0 // pred_fallthru
    _
  // Predicated region
  $region6: #{autoencoder_lin_forward.1} parent=0 // pred_check
    _
  $region7: #{autoencoder_lin_forward.1} parent=0 // pred_check_branch
    %17 = sbr.rel (0) target = $region9
  $region8: #{autoencoder_lin_forward.1} parent=0 // pred_region
    _
  $region9: #{autoencoder_lin_forward.1} parent=0 // pred_fallthru
    _
  // Predicated region
  $region10: #{autoencoder_lin_forward.1} parent=0 // pred_check
    _
  $region11: #{autoencoder_lin_forward.1} parent=0 // pred_check_branch
    %19 = sbr.rel (0) target = $region13
  $region12: #{autoencoder_lin_forward.1} parent=0 // pred_region
    _
  $region13: #{autoencoder_lin_forward.1} parent=0 // pred_fallthru
    _
  // Predicated region
  $region14: #{autoencoder_lin_forward.1} parent=0 // pred_check
    _
  $region15: #{autoencoder_lin_forward.1} parent=0 // pred_check_branch
    %21 = sbr.rel (0) target = $region17
  $region16: #{autoencoder_lin_forward.1} parent=0 // pred_region
    _
  $region17: #{autoencoder_lin_forward.1} parent=0 // pred_fallthru
    _
  // Predicated region
  $region18: #{autoencoder_lin_forward.1} parent=0 // pred_check
    _
  $region19: #{autoencoder_lin_forward.1} parent=0 // pred_check_branch
    %23 = sbr.rel (0) target = $region21
  $region20: #{autoencoder_lin_forward.1} parent=0 // pred_region
    _
  $region21: #{autoencoder_lin_forward.1} parent=0 // pred_fallthru
    _
  // Predicated region
  $region22: #{autoencoder_lin_forward.1} parent=0 // pred_check
    _
  $region23: #{autoencoder_lin_forward.1} parent=0 // pred_check_branch
    %25 = sbr.rel (0) target = $region25
  $region24: #{autoencoder_lin_forward.1} parent=0 // pred_region
    _
  $region25: #{autoencoder_lin_forward.1} parent=0 // pred_fallthru
    _
  // Predicated region
  $region26: #{autoencoder_lin_forward.1} parent=0 // pred_check
    _
  $region27: #{autoencoder_lin_forward.1} parent=0 // pred_check_branch
    %27 = sbr.rel (0) target = $region29
  $region28: #{autoencoder_lin_forward.1} parent=0 // pred_region
    _
  $region29: #{autoencoder_lin_forward.1} parent=0 // pred_fallthru
    _
  // Predicated region
  $region30: #{autoencoder_lin_forward.1} parent=0 // pred_check
    _
  $region31: #{autoencoder_lin_forward.1} parent=0 // pred_check_branch
    %29 = sbr.rel (0) target = $region33
  $region32: #{autoencoder_lin_forward.1} parent=0 // pred_region
    _
  $region33: #{autoencoder_lin_forward.1} parent=0 // pred_fallthru
    _
  // Predicated region
  $region34: #{autoencoder_lin_forward.1} parent=0 // pred_check
    _
  $region35: #{autoencoder_lin_forward.1} parent=0 // pred_check_branch
    %31 = sbr.rel (0) target = $region37
  $region36: #{autoencoder_lin_forward.1} parent=0 // pred_region
    _
  $region37: #{autoencoder_lin_forward.1} parent=0 // pred_fallthru
    _
  %v33 = vld [vmem:[%s0] sm:$0xff]
  %v34 = vld [vmem:[%s0 + $0x8] sm:$0xff]
  %v35 = vld [vmem:[%s0 + $0x10] sm:$0xff]
  %v36 = vld [vmem:[%s0 + $0x18] sm:$0xff]
  %v37 = vld [vmem:[%s0 + $0x20] sm:$0xff]
  %v38 = vld [vmem:[%s0 + $0x28] sm:$0xff]
  %v39 = vld [vmem:[%s0 + $0x30] sm:$0xff]
  %v40 = vld [vmem:[%s0 + $0x38] sm:$0xff]
  %v41 = vld [vmem:[%s0 + $0x40] sm:$0xff]
  %v42 = vld [vmem:[%s0 + $0x48] sm:$0xff]
  %v43 = vld [vmem:[%s0 + $0x50] sm:$0xff]
  %v44 = vld [vmem:[%s0 + $0x58] sm:$0xff]
  %v45 = vld [vmem:[%s0 + $0x60] sm:$0xff]
  %v46 = vld [vmem:[%s0 + $0x68] sm:$0xff]
  %v47 = vpack.c.bf16 %v40, %v33
  %v48 = vpack.c.bf16 %v41, %v34
  %v49 = vpack.c.bf16 %v42, %v35
  %v50 = vpack.c.bf16 %v43, %v36
  %v51 = vpack.c.bf16 %v44, %v37
  %v52 = vpack.c.bf16 %v45, %v38
  %v53 = vpack.c.bf16 %v46, %v39
  %v54 = vld [vmem:[%s1] sm:$0xff]
  %v55 = vld [vmem:[%s1 + $0x8] sm:$0xff]
  %v56 = vld [vmem:[%s1 + $0x10] sm:$0xff]
  %v57 = vld [vmem:[%s1 + $0x18] sm:$0xff]
  %v58 = vld [vmem:[%s1 + $0x20] sm:$0xff]
  %v59 = vld [vmem:[%s1 + $0x28] sm:$0xff]
  %v60 = vld [vmem:[%s1 + $0x30] sm:$0xff]
  %v61 = vld [vmem:[%s1 + $0x38] sm:$0xff]
  %v62 = vld [vmem:[%s1 + $0x40] sm:$0xff]
  %v63 = vld [vmem:[%s1 + $0x48] sm:$0xff]
  %v64 = vld [vmem:[%s1 + $0x50] sm:$0xff]
  %v65 = vld [vmem:[%s1 + $0x58] sm:$0xff]
  %v66 = vld [vmem:[%s1 + $0x60] sm:$0xff]
  %v67 = vld [vmem:[%s1 + $0x68] sm:$0xff]
  %v68 = vld [vmem:[%s1 + $0x70] sm:$0xff]
  %v69 = vld [vmem:[%s1 + $0x78] sm:$0xff]
  %v70 = vld [vmem:[%s1 + $0x80] sm:$0xff]
  %v71 = vld [vmem:[%s1 + $0x88] sm:$0xff]
  %v72 = vld [vmem:[%s1 + $0x90] sm:$0xff]
  %v73 = vld [vmem:[%s1 + $0x98] sm:$0xff]
  %v74 = vld [vmem:[%s1 + $0xa0] sm:$0xff]
  %v75 = vld [vmem:[%s1 + $0xa8] sm:$0xff]
  %v76 = vld [vmem:[%s1 + $0xb0] sm:$0xff]
  %v77 = vld [vmem:[%s1 + $0xb8] sm:$0xff]
  %v78 = vld [vmem:[%s1 + $0xc0] sm:$0xff]
  %v79 = vld [vmem:[%s1 + $0xc8] sm:$0xff]
  %v80 = vld [vmem:[%s1 + $0xd0] sm:$0xff]
  %v81 = vld [vmem:[%s1 + $0xd8] sm:$0xff]
  %v82 = vld [vmem:[%s1 + $0xe0] sm:$0xff]
  %v83 = vld [vmem:[%s1 + $0xe8] sm:$0xff]
  %v84 = vld [vmem:[%s1 + $0xf0] sm:$0xff]
  %v85 = vld [vmem:[%s1 + $0xf8] sm:$0xff]
  %v86 = vld [vmem:[%s1 + $0x100] sm:$0xff]
  %v87 = vld [vmem:[%s1 + $0x108] sm:$0xff]
  %v88 = vld [vmem:[%s1 + $0x110] sm:$0xff]
  %v89 = vld [vmem:[%s1 + $0x118] sm:$0xff]
  %v90 = vld [vmem:[%s1 + $0x120] sm:$0xff]
  %v91 = vld [vmem:[%s1 + $0x128] sm:$0xff]
  %v92 = vld [vmem:[%s1 + $0x130] sm:$0xff]
  %v93 = vld [vmem:[%s1 + $0x138] sm:$0xff]
  %v94 = vld [vmem:[%s1 + $0x140] sm:$0xff]
  %v95 = vld [vmem:[%s1 + $0x148] sm:$0xff]
  %v96 = vld [vmem:[%s1 + $0x150] sm:$0xff]
  %v97 = vld [vmem:[%s1 + $0x158] sm:$0xff]
  %v98 = vld [vmem:[%s1 + $0x160] sm:$0xff]
  %v99 = vld [vmem:[%s1 + $0x168] sm:$0xff]
  %v100 = vld [vmem:[%s1 + $0x170] sm:$0xff]
  %v101 = vld [vmem:[%s1 + $0x178] sm:$0xff]
  %v102 = vld [vmem:[%s1 + $0x180] sm:$0xff]
  %v103 = vld [vmem:[%s1 + $0x188] sm:$0xff]
  %v104 = vld [vmem:[%s1 + $0x190] sm:$0xff]
  %v105 = vld [vmem:[%s1 + $0x198] sm:$0xff]
  %v106 = vld [vmem:[%s1 + $0x1a0] sm:$0xff]
  %v107 = vld [vmem:[%s1 + $0x1a8] sm:$0xff]
  %v108 = vld [vmem:[%s1 + $0x1b0] sm:$0xff]
  %v109 = vld [vmem:[%s1 + $0x1b8] sm:$0xff]
  %v110 = vld [vmem:[%s1 + $0x1c0] sm:$0xff]
  %v111 = vld [vmem:[%s1 + $0x1c8] sm:$0xff]
  %v112 = vld [vmem:[%s1 + $0x1d0] sm:$0xff]
  %v113 = vld [vmem:[%s1 + $0x1d8] sm:$0xff]
  %v114 = vld [vmem:[%s1 + $0x1e0] sm:$0xff]
  %v115 = vld [vmem:[%s1 + $0x1e8] sm:$0xff]
  %v116 = vld [vmem:[%s1 + $0x1f0] sm:$0xff]
  %v117 = vld [vmem:[%s1 + $0x1f8] sm:$0xff]
  %v118 = vld [vmem:[%s1 + $0x200] sm:$0xff]
  %v119 = vld [vmem:[%s1 + $0x208] sm:$0xff]
  %v120 = vld [vmem:[%s1 + $0x210] sm:$0xff]
  %v121 = vld [vmem:[%s1 + $0x218] sm:$0xff]
  %v122 = vld [vmem:[%s1 + $0x220] sm:$0xff]
  %v123 = vld [vmem:[%s1 + $0x228] sm:$0xff]
  %v124 = vld [vmem:[%s1 + $0x230] sm:$0xff]
  %v125 = vld [vmem:[%s1 + $0x238] sm:$0xff]
  %v126 = vld [vmem:[%s1 + $0x240] sm:$0xff]
  %v127 = vld [vmem:[%s1 + $0x248] sm:$0xff]
  %v128 = vld [vmem:[%s1 + $0x250] sm:$0xff]
  %v129 = vld [vmem:[%s1 + $0x258] sm:$0xff]
  %v130 = vld [vmem:[%s1 + $0x260] sm:$0xff]
  %v131 = vld [vmem:[%s1 + $0x268] sm:$0xff]
  %v132 = vld [vmem:[%s1 + $0x270] sm:$0xff]
  %v133 = vld [vmem:[%s1 + $0x278] sm:$0xff]
  %v134 = vld [vmem:[%s1 + $0x280] sm:$0xff]
  %v135 = vld [vmem:[%s1 + $0x288] sm:$0xff]
  %v136 = vld [vmem:[%s1 + $0x290] sm:$0xff]
  %v137 = vld [vmem:[%s1 + $0x298] sm:$0xff]
  %v138 = vld [vmem:[%s1 + $0x2a0] sm:$0xff]
  %v139 = vld [vmem:[%s1 + $0x2a8] sm:$0xff]
  %v140 = vld [vmem:[%s1 + $0x2b0] sm:$0xff]
  %v141 = vld [vmem:[%s1 + $0x2b8] sm:$0xff]
  %v142 = vld [vmem:[%s1 + $0x2c0] sm:$0xff]
  %v143 = vld [vmem:[%s1 + $0x2c8] sm:$0xff]
  %v144 = vld [vmem:[%s1 + $0x2d0] sm:$0xff]
  %v145 = vld [vmem:[%s1 + $0x2d8] sm:$0xff]
  %v146 = vld [vmem:[%s1 + $0x2e0] sm:$0xff]
  %v147 = vld [vmem:[%s1 + $0x2e8] sm:$0xff]
  %v148 = vld [vmem:[%s1 + $0x2f0] sm:$0xff]
  %v149 = vld [vmem:[%s1 + $0x2f8] sm:$0xff]
  %v150 = vld [vmem:[%s1 + $0x300] sm:$0xff]
  %v151 = vld [vmem:[%s1 + $0x308] sm:$0xff]
  %v152 = vld [vmem:[%s2] sm:$0x3]
  %v154 = vperm.slane %v152, 0
  %v155 = vperm.slane %v152, 1
  %v256 = vunpack.c.l.b16 %v54
  %v257 = vunpack.c.h.b16 %v54
  %v258 = vunpack.c.l.b16 %v55
  %v259 = vunpack.c.h.b16 %v55
  %v260 = vunpack.c.l.b16 %v56
  %v261 = vunpack.c.h.b16 %v56
  %v262 = vunpack.c.l.b16 %v57
  %v263 = vunpack.c.h.b16 %v57
  %v264 = vunpack.c.l.b16 %v58
  %v265 = vunpack.c.h.b16 %v58
  %v266 = vunpack.c.l.b16 %v59
  %v267 = vunpack.c.h.b16 %v59
  %v268 = vunpack.c.l.b16 %v60
  %v269 = vunpack.c.h.b16 %v60
  %v270 = vunpack.c.l.b16 %v61
  %v271 = vunpack.c.h.b16 %v61
  %v272 = vunpack.c.l.b16 %v62
  %v273 = vunpack.c.h.b16 %v62
  %v274 = vunpack.c.l.b16 %v63
  %v275 = vunpack.c.h.b16 %v63
  %v276 = vunpack.c.l.b16 %v64
  %v277 = vunpack.c.h.b16 %v64
  %v278 = vunpack.c.l.b16 %v65
  %v279 = vunpack.c.h.b16 %v65
  %v280 = vunpack.c.l.b16 %v66
  %v281 = vunpack.c.h.b16 %v66
  %v282 = vunpack.c.l.b16 %v67
  %v283 = vunpack.c.h.b16 %v67
  %v284 = vunpack.c.l.b16 %v68
  %v285 = vunpack.c.h.b16 %v68
  %v286 = vunpack.c.l.b16 %v69
  %v287 = vunpack.c.h.b16 %v69
  %v288 = vunpack.c.l.b16 %v70
  %v289 = vunpack.c.h.b16 %v70
  %v290 = vunpack.c.l.b16 %v71
  %v291 = vunpack.c.h.b16 %v71
  %v292 = vunpack.c.l.b16 %v72
  %v293 = vunpack.c.h.b16 %v72
  %v294 = vunpack.c.l.b16 %v73
  %v295 = vunpack.c.h.b16 %v73
  %v296 = vunpack.c.l.b16 %v74
  %v297 = vunpack.c.h.b16 %v74
  %v298 = vunpack.c.l.b16 %v75
  %v299 = vunpack.c.h.b16 %v75
  %v300 = vunpack.c.l.b16 %v76
  %v301 = vunpack.c.h.b16 %v76
  %v302 = vunpack.c.l.b16 %v77
  %v303 = vunpack.c.h.b16 %v77
  %v304 = vunpack.c.l.b16 %v78
  %v305 = vunpack.c.h.b16 %v78
  %v306 = vunpack.c.l.b16 %v79
  %v307 = vunpack.c.h.b16 %v79
  %v308 = vunpack.c.l.b16 %v80
  %v309 = vunpack.c.h.b16 %v80
  %v310 = vunpack.c.l.b16 %v81
  %v311 = vunpack.c.h.b16 %v81
  %v312 = vunpack.c.l.b16 %v82
  %v313 = vunpack.c.h.b16 %v82
  %v314 = vunpack.c.l.b16 %v83
  %v315 = vunpack.c.h.b16 %v83
  %v316 = vunpack.c.l.b16 %v84
  %v317 = vunpack.c.h.b16 %v84
  %v318 = vunpack.c.l.b16 %v85
  %v319 = vunpack.c.h.b16 %v85
  %v320 = vunpack.c.l.b16 %v86
  %v321 = vunpack.c.h.b16 %v86
  %v322 = vunpack.c.l.b16 %v87
  %v323 = vunpack.c.h.b16 %v87
  %v324 = vunpack.c.l.b16 %v88
  %v325 = vunpack.c.h.b16 %v88
  %v326 = vunpack.c.l.b16 %v89
  %v327 = vunpack.c.h.b16 %v89
  %v328 = vunpack.c.l.b16 %v90
  %v329 = vunpack.c.h.b16 %v90
  %v330 = vunpack.c.l.b16 %v91
  %v331 = vunpack.c.h.b16 %v91
  %v332 = vunpack.c.l.b16 %v92
  %v333 = vunpack.c.h.b16 %v92
  %v334 = vunpack.c.l.b16 %v93
  %v335 = vunpack.c.h.b16 %v93
  %v336 = vunpack.c.l.b16 %v94
  %v337 = vunpack.c.h.b16 %v94
  %v338 = vunpack.c.l.b16 %v95
  %v339 = vunpack.c.h.b16 %v95
  %v340 = vunpack.c.l.b16 %v96
  %v341 = vunpack.c.h.b16 %v96
  %v342 = vunpack.c.l.b16 %v97
  %v343 = vunpack.c.h.b16 %v97
  %v344 = vunpack.c.l.b16 %v98
  %v345 = vunpack.c.h.b16 %v98
  %v346 = vunpack.c.l.b16 %v99
  %v347 = vunpack.c.h.b16 %v99
  %v348 = vunpack.c.l.b16 %v100
  %v349 = vunpack.c.h.b16 %v100
  %v350 = vunpack.c.l.b16 %v101
  %v351 = vunpack.c.h.b16 %v101
  %v352 = vunpack.c.l.b16 %v102
  %v353 = vunpack.c.h.b16 %v102
  %v354 = vunpack.c.l.b16 %v103
  %v355 = vunpack.c.h.b16 %v103
  %v356 = vunpack.c.l.b16 %v104
  %v357 = vunpack.c.h.b16 %v104
  %v358 = vunpack.c.l.b16 %v105
  %v359 = vunpack.c.h.b16 %v105
  %v360 = vunpack.c.l.b16 %v106
  %v361 = vunpack.c.h.b16 %v106
  %v362 = vunpack.c.l.b16 %v107
  %v363 = vunpack.c.h.b16 %v107
  %v364 = vunpack.c.l.b16 %v108
  %v365 = vunpack.c.h.b16 %v108
  %v366 = vunpack.c.l.b16 %v109
  %v367 = vunpack.c.h.b16 %v109
  %v368 = vunpack.c.l.b16 %v110
  %v369 = vunpack.c.h.b16 %v110
  %v370 = vunpack.c.l.b16 %v111
  %v371 = vunpack.c.h.b16 %v111
  %v372 = vunpack.c.l.b16 %v112
  %v373 = vunpack.c.h.b16 %v112
  %v374 = vunpack.c.l.b16 %v113
  %v375 = vunpack.c.h.b16 %v113
  %v376 = vunpack.c.l.b16 %v114
  %v377 = vunpack.c.h.b16 %v114
  %v378 = vunpack.c.l.b16 %v115
  %v379 = vunpack.c.h.b16 %v115
  %v380 = vunpack.c.l.b16 %v116
  %v381 = vunpack.c.h.b16 %v116
  %v382 = vunpack.c.l.b16 %v117
  %v383 = vunpack.c.h.b16 %v117
  %v384 = vunpack.c.l.b16 %v118
  %v385 = vunpack.c.h.b16 %v118
  %v386 = vunpack.c.l.b16 %v119
  %v387 = vunpack.c.h.b16 %v119
  %v388 = vunpack.c.l.b16 %v120
  %v389 = vunpack.c.h.b16 %v120
  %v390 = vunpack.c.l.b16 %v121
  %v391 = vunpack.c.h.b16 %v121
  %v392 = vunpack.c.l.b16 %v122
  %v393 = vunpack.c.h.b16 %v122
  %v394 = vunpack.c.l.b16 %v123
  %v395 = vunpack.c.h.b16 %v123
  %v396 = vunpack.c.l.b16 %v124
  %v397 = vunpack.c.h.b16 %v124
  %v398 = vunpack.c.l.b16 %v125
  %v399 = vunpack.c.h.b16 %v125
  %v400 = vunpack.c.l.b16 %v126
  %v401 = vunpack.c.h.b16 %v126
  %v402 = vunpack.c.l.b16 %v127
  %v403 = vunpack.c.h.b16 %v127
  %v404 = vunpack.c.l.b16 %v128
  %v405 = vunpack.c.h.b16 %v128
  %v406 = vunpack.c.l.b16 %v129
  %v407 = vunpack.c.h.b16 %v129
  %v408 = vunpack.c.l.b16 %v130
  %v409 = vunpack.c.h.b16 %v130
  %v410 = vunpack.c.l.b16 %v131
  %v411 = vunpack.c.h.b16 %v131
  %v412 = vunpack.c.l.b16 %v132
  %v413 = vunpack.c.h.b16 %v132
  %v414 = vunpack.c.l.b16 %v133
  %v415 = vunpack.c.h.b16 %v133
  %v416 = vunpack.c.l.b16 %v134
  %v417 = vunpack.c.h.b16 %v134
  %v418 = vunpack.c.l.b16 %v135
  %v419 = vunpack.c.h.b16 %v135
  %v420 = vunpack.c.l.b16 %v136
  %v421 = vunpack.c.h.b16 %v136
  %v422 = vunpack.c.l.b16 %v137
  %v423 = vunpack.c.h.b16 %v137
  %v424 = vunpack.c.l.b16 %v138
  %v425 = vunpack.c.h.b16 %v138
  %v426 = vunpack.c.l.b16 %v139
  %v427 = vunpack.c.h.b16 %v139
  %v428 = vunpack.c.l.b16 %v140
  %v429 = vunpack.c.h.b16 %v140
  %v430 = vunpack.c.l.b16 %v141
  %v431 = vunpack.c.h.b16 %v141
  %v432 = vunpack.c.l.b16 %v142
  %v433 = vunpack.c.h.b16 %v142
  %v434 = vunpack.c.l.b16 %v143
  %v435 = vunpack.c.h.b16 %v143
  %v436 = vunpack.c.l.b16 %v144
  %v437 = vunpack.c.h.b16 %v144
  %v438 = vunpack.c.l.b16 %v145
  %v439 = vunpack.c.h.b16 %v145
  %v440 = vunpack.c.l.b16 %v146
  %v441 = vunpack.c.h.b16 %v146
  %v442 = vunpack.c.l.b16 %v147
  %v443 = vunpack.c.h.b16 %v147
  %v444 = vunpack.c.l.b16 %v148
  %v445 = vunpack.c.h.b16 %v148
  %v446 = vunpack.c.l.b16 %v149
  %v447 = vunpack.c.h.b16 %v149
  %v448 = vunpack.c.l.b16 %v150
  %v449 = vunpack.c.h.b16 %v150
  %v450 = vunpack.c.l.b16 %v151
  %v451 = vunpack.c.h.b16 %v151
  %v452 = vpack.c.b16 %v258, %v256
  %v453 = vpack.c.b16 %v259, %v257
  %v454 = vpack.c.b16 %v262, %v260
  %v455 = vpack.c.b16 %v263, %v261
  %v456 = vpack.c.b16 %v266, %v264
  %v457 = vpack.c.b16 %v267, %v265
  %v458 = vpack.c.b16 %v270, %v268
  %v459 = vpack.c.b16 %v271, %v269
  %v460 = vpack.c.b16 %v274, %v272
  %v461 = vpack.c.b16 %v275, %v273
  %v462 = vpack.c.b16 %v278, %v276
  %v463 = vpack.c.b16 %v279, %v277
  %v464 = vpack.c.b16 %v282, %v280
  %v465 = vpack.c.b16 %v283, %v281
  %v466 = vpack.c.b16 %v286, %v284
  %v467 = vpack.c.b16 %v287, %v285
  %v468 = vpack.c.b16 %v290, %v288
  %v469 = vpack.c.b16 %v291, %v289
  %v470 = vpack.c.b16 %v294, %v292
  %v471 = vpack.c.b16 %v295, %v293
  %v472 = vpack.c.b16 %v298, %v296
  %v473 = vpack.c.b16 %v299, %v297
  %v474 = vpack.c.b16 %v302, %v300
  %v475 = vpack.c.b16 %v303, %v301
  %v476 = vpack.c.b16 %v306, %v304
  %v477 = vpack.c.b16 %v307, %v305
  %v478 = vpack.c.b16 %v310, %v308
  %v479 = vpack.c.b16 %v311, %v309
  %v480 = vpack.c.b16 %v314, %v312
  %v481 = vpack.c.b16 %v315, %v313
  %v482 = vpack.c.b16 %v318, %v316
  %v483 = vpack.c.b16 %v319, %v317
  %v484 = vpack.c.b16 %v322, %v320
  %v485 = vpack.c.b16 %v323, %v321
  %v486 = vpack.c.b16 %v326, %v324
  %v487 = vpack.c.b16 %v327, %v325
  %v488 = vpack.c.b16 %v330, %v328
  %v489 = vpack.c.b16 %v331, %v329
  %v490 = vpack.c.b16 %v334, %v332
  %v491 = vpack.c.b16 %v335, %v333
  %v492 = vpack.c.b16 %v338, %v336
  %v493 = vpack.c.b16 %v339, %v337
  %v494 = vpack.c.b16 %v342, %v340
  %v495 = vpack.c.b16 %v343, %v341
  %v496 = vpack.c.b16 %v346, %v344
  %v497 = vpack.c.b16 %v347, %v345
  %v498 = vpack.c.b16 %v350, %v348
  %v499 = vpack.c.b16 %v351, %v349
  %v500 = vpack.c.b16 %v354, %v352
  %v501 = vpack.c.b16 %v355, %v353
  %v502 = vpack.c.b16 %v358, %v356
  %v503 = vpack.c.b16 %v359, %v357
  %v504 = vpack.c.b16 %v362, %v360
  %v505 = vpack.c.b16 %v363, %v361
  %v506 = vpack.c.b16 %v366, %v364
  %v507 = vpack.c.b16 %v367, %v365
  %v508 = vpack.c.b16 %v370, %v368
  %v509 = vpack.c.b16 %v371, %v369
  %v510 = vpack.c.b16 %v374, %v372
  %v511 = vpack.c.b16 %v375, %v373
  %v512 = vpack.c.b16 %v378, %v376
  %v513 = vpack.c.b16 %v379, %v377
  %v514 = vpack.c.b16 %v382, %v380
  %v515 = vpack.c.b16 %v383, %v381
  %v516 = vpack.c.b16 %v386, %v384
  %v517 = vpack.c.b16 %v387, %v385
  %v518 = vpack.c.b16 %v390, %v388
  %v519 = vpack.c.b16 %v391, %v389
  %v520 = vpack.c.b16 %v394, %v392
  %v521 = vpack.c.b16 %v395, %v393
  %v522 = vpack.c.b16 %v398, %v396
  %v523 = vpack.c.b16 %v399, %v397
  %v524 = vpack.c.b16 %v402, %v400
  %v525 = vpack.c.b16 %v403, %v401
  %v526 = vpack.c.b16 %v406, %v404
  %v527 = vpack.c.b16 %v407, %v405
  %v528 = vpack.c.b16 %v410, %v408
  %v529 = vpack.c.b16 %v411, %v409
  %v530 = vpack.c.b16 %v414, %v412
  %v531 = vpack.c.b16 %v415, %v413
  %v532 = vpack.c.b16 %v418, %v416
  %v533 = vpack.c.b16 %v419, %v417
  %v534 = vpack.c.b16 %v422, %v420
  %v535 = vpack.c.b16 %v423, %v421
  %v536 = vpack.c.b16 %v426, %v424
  %v537 = vpack.c.b16 %v427, %v425
  %v538 = vpack.c.b16 %v430, %v428
  %v539 = vpack.c.b16 %v431, %v429
  %v540 = vpack.c.b16 %v434, %v432
  %v541 = vpack.c.b16 %v435, %v433
  %v542 = vpack.c.b16 %v438, %v436
  %v543 = vpack.c.b16 %v439, %v437
  %v544 = vpack.c.b16 %v442, %v440
  %v545 = vpack.c.b16 %v443, %v441
  %v546 = vpack.c.b16 %v446, %v444
  %v547 = vpack.c.b16 %v447, %v445
  %v548 = vpack.c.b16 %v450, %v448
  %v549 = vpack.c.b16 %v451, %v449
  %vm648 = vcmask 130048
  %v650 = vsel %vm648, %v53, 0
  %652 = vmatpush.bf16.msra.mxu0 %v466
  %653 = vmatpush.bf16.msra.mxu0 %v464
  %654 = vmatpush.bf16.msra.mxu0 %v462
  %655 = vmatpush.bf16.msra.mxu0 %v460
  %656 = vmatpush.bf16.msra.mxu0 %v458
  %657 = vmatpush.bf16.msra.mxu0 %v456
  %658 = vmatpush.bf16.msra.mxu0 %v454
  %659 = vmatpush.bf16.msra.mxu0 %v452
  %660 = vmatmul.bf16.gmra.mxu0 %v47
  %v661 = vpop.f32.mrf.mxu0
  %v662 = vadd.f32 %v154, %v661
  %v663 = vpop.f32.mrf.mxu0
  %v664 = vadd.f32 %v154, %v663
  %665 = vdwg.mxu0
  %666 = vmatpush.bf16.msra.mxu0 %v482
  %667 = vmatpush.bf16.msra.mxu0 %v480
  %668 = vmatpush.bf16.msra.mxu0 %v478
  %669 = vmatpush.bf16.msra.mxu0 %v476
  %670 = vmatpush.bf16.msra.mxu0 %v474
  %671 = vmatpush.bf16.msra.mxu0 %v472
  %672 = vmatpush.bf16.msra.mxu0 %v470
  %673 = vmatpush.bf16.msra.mxu0 %v468
  %674 = vmatmul.bf16.gmra.mxu0 %v48
  %v675 = vpop.f32.mrf.mxu0
  %v676 = vadd.f32 %v662, %v675
  %v677 = vpop.f32.mrf.mxu0
  %v678 = vadd.f32 %v664, %v677
  %679 = vdwg.mxu0
  %680 = vmatpush.bf16.msra.mxu0 %v498
  %681 = vmatpush.bf16.msra.mxu0 %v496
  %682 = vmatpush.bf16.msra.mxu0 %v494
  %683 = vmatpush.bf16.msra.mxu0 %v492
  %684 = vmatpush.bf16.msra.mxu0 %v490
  %685 = vmatpush.bf16.msra.mxu0 %v488
  %686 = vmatpush.bf16.msra.mxu0 %v486
  %687 = vmatpush.bf16.msra.mxu0 %v484
  %688 = vmatmul.bf16.gmra.mxu0 %v49
  %v689 = vpop.f32.mrf.mxu0
  %v690 = vadd.f32 %v676, %v689
  %v691 = vpop.f32.mrf.mxu0
  %v692 = vadd.f32 %v678, %v691
  %693 = vdwg.mxu0
  %694 = vmatpush.bf16.msra.mxu0 %v514
  %695 = vmatpush.bf16.msra.mxu0 %v512
  %696 = vmatpush.bf16.msra.mxu0 %v510
  %697 = vmatpush.bf16.msra.mxu0 %v508
  %698 = vmatpush.bf16.msra.mxu0 %v506
  %699 = vmatpush.bf16.msra.mxu0 %v504
  %700 = vmatpush.bf16.msra.mxu0 %v502
  %701 = vmatpush.bf16.msra.mxu0 %v500
  %702 = vmatmul.bf16.gmra.mxu0 %v50
  %v703 = vpop.f32.mrf.mxu0
  %v704 = vadd.f32 %v690, %v703
  %v705 = vpop.f32.mrf.mxu0
  %v706 = vadd.f32 %v692, %v705
  %707 = vdwg.mxu0
  %708 = vmatpush.bf16.msra.mxu0 %v530
  %709 = vmatpush.bf16.msra.mxu0 %v528
  %710 = vmatpush.bf16.msra.mxu0 %v526
  %711 = vmatpush.bf16.msra.mxu0 %v524
  %712 = vmatpush.bf16.msra.mxu0 %v522
  %713 = vmatpush.bf16.msra.mxu0 %v520
  %714 = vmatpush.bf16.msra.mxu0 %v518
  %715 = vmatpush.bf16.msra.mxu0 %v516
  %716 = vmatmul.bf16.gmra.mxu0 %v51
  %v717 = vpop.f32.mrf.mxu0
  %v718 = vadd.f32 %v704, %v717
  %v719 = vpop.f32.mrf.mxu0
  %v720 = vadd.f32 %v706, %v719
  %721 = vdwg.mxu0
  %722 = vmatpush.bf16.msra.mxu0 %v546
  %723 = vmatpush.bf16.msra.mxu0 %v544
  %724 = vmatpush.bf16.msra.mxu0 %v542
  %725 = vmatpush.bf16.msra.mxu0 %v540
  %726 = vmatpush.bf16.msra.mxu0 %v538
  %727 = vmatpush.bf16.msra.mxu0 %v536
  %728 = vmatpush.bf16.msra.mxu0 %v534
  %729 = vmatpush.bf16.msra.mxu0 %v532
  %730 = vmatmul.bf16.gmra.mxu0 %v52
  %v731 = vpop.f32.mrf.mxu0
  %v732 = vadd.f32 %v718, %v731
  %v733 = vpop.f32.mrf.mxu0
  %v734 = vadd.f32 %v720, %v733
  %735 = vdwg.mxu0
  %736 = vmatpush.bf16.msra.mxu0 0
  %737 = vmatpush.bf16.msra.mxu0 0
  %738 = vmatpush.bf16.msra.mxu0 0
  %739 = vmatpush.bf16.msra.mxu0 0
  %740 = vmatpush.bf16.msra.mxu0 0
  %741 = vmatpush.bf16.msra.mxu0 0
  %742 = vmatpush.bf16.msra.mxu0 0
  %743 = vmatpush.bf16.msra.mxu0 %v548
  %744 = vmatmul.bf16.gmra.mxu0 %v650
  %v745 = vpop.f32.mrf.mxu0
  %v746 = vadd.f32 %v732, %v745
  %v747 = vpop.f32.mrf.mxu0
  %v748 = vadd.f32 %v734, %v747
  %749 = vdwg.mxu0
  %750 = vmatpush.bf16.msra.mxu0 %v467
  %751 = vmatpush.bf16.msra.mxu0 %v465
  %752 = vmatpush.bf16.msra.mxu0 %v463
  %753 = vmatpush.bf16.msra.mxu0 %v461
  %754 = vmatpush.bf16.msra.mxu0 %v459
  %755 = vmatpush.bf16.msra.mxu0 %v457
  %756 = vmatpush.bf16.msra.mxu0 %v455
  %757 = vmatpush.bf16.msra.mxu0 %v453
  %758 = vmatmul.bf16.gmra.mxu0 %v47
  %v759 = vpop.f32.mrf.mxu0
  %v760 = vadd.f32 %v155, %v759
  %v761 = vpop.f32.mrf.mxu0
  %v762 = vadd.f32 %v155, %v761
  %763 = vdwg.mxu0
  %764 = vmatpush.bf16.msra.mxu0 %v483
  %765 = vmatpush.bf16.msra.mxu0 %v481
  %766 = vmatpush.bf16.msra.mxu0 %v479
  %767 = vmatpush.bf16.msra.mxu0 %v477
  %768 = vmatpush.bf16.msra.mxu0 %v475
  %769 = vmatpush.bf16.msra.mxu0 %v473
  %770 = vmatpush.bf16.msra.mxu0 %v471
  %771 = vmatpush.bf16.msra.mxu0 %v469
  %772 = vmatmul.bf16.gmra.mxu0 %v48
  %v773 = vpop.f32.mrf.mxu0
  %v774 = vadd.f32 %v760, %v773
  %v775 = vpop.f32.mrf.mxu0
  %v776 = vadd.f32 %v762, %v775
  %777 = vdwg.mxu0
  %778 = vmatpush.bf16.msra.mxu0 %v499
  %779 = vmatpush.bf16.msra.mxu0 %v497
  %780 = vmatpush.bf16.msra.mxu0 %v495
  %781 = vmatpush.bf16.msra.mxu0 %v493
  %782 = vmatpush.bf16.msra.mxu0 %v491
  %783 = vmatpush.bf16.msra.mxu0 %v489
  %784 = vmatpush.bf16.msra.mxu0 %v487
  %785 = vmatpush.bf16.msra.mxu0 %v485
  %786 = vmatmul.bf16.gmra.mxu0 %v49
  %v787 = vpop.f32.mrf.mxu0
  %v788 = vadd.f32 %v774, %v787
  %v789 = vpop.f32.mrf.mxu0
  %v790 = vadd.f32 %v776, %v789
  %791 = vdwg.mxu0
  %792 = vmatpush.bf16.msra.mxu0 %v515
  %793 = vmatpush.bf16.msra.mxu0 %v513
  %794 = vmatpush.bf16.msra.mxu0 %v511
  %795 = vmatpush.bf16.msra.mxu0 %v509
  %796 = vmatpush.bf16.msra.mxu0 %v507
  %797 = vmatpush.bf16.msra.mxu0 %v505
  %798 = vmatpush.bf16.msra.mxu0 %v503
  %799 = vmatpush.bf16.msra.mxu0 %v501
  %800 = vmatmul.bf16.gmra.mxu0 %v50
  %v801 = vpop.f32.mrf.mxu0
  %v802 = vadd.f32 %v788, %v801
  %v803 = vpop.f32.mrf.mxu0
  %v804 = vadd.f32 %v790, %v803
  %805 = vdwg.mxu0
  %806 = vmatpush.bf16.msra.mxu0 %v531
  %807 = vmatpush.bf16.msra.mxu0 %v529
  %808 = vmatpush.bf16.msra.mxu0 %v527
  %809 = vmatpush.bf16.msra.mxu0 %v525
  %810 = vmatpush.bf16.msra.mxu0 %v523
  %811 = vmatpush.bf16.msra.mxu0 %v521
  %812 = vmatpush.bf16.msra.mxu0 %v519
  %813 = vmatpush.bf16.msra.mxu0 %v517
  %814 = vmatmul.bf16.gmra.mxu0 %v51
  %v815 = vpop.f32.mrf.mxu0
  %v816 = vadd.f32 %v802, %v815
  %v817 = vpop.f32.mrf.mxu0
  %v818 = vadd.f32 %v804, %v817
  %819 = vdwg.mxu0
  %820 = vmatpush.bf16.msra.mxu0 %v547
  %821 = vmatpush.bf16.msra.mxu0 %v545
  %822 = vmatpush.bf16.msra.mxu0 %v543
  %823 = vmatpush.bf16.msra.mxu0 %v541
  %824 = vmatpush.bf16.msra.mxu0 %v539
  %825 = vmatpush.bf16.msra.mxu0 %v537
  %826 = vmatpush.bf16.msra.mxu0 %v535
  %827 = vmatpush.bf16.msra.mxu0 %v533
  %828 = vmatmul.bf16.gmra.mxu0 %v52
  %v829 = vpop.f32.mrf.mxu0
  %v830 = vadd.f32 %v816, %v829
  %v831 = vpop.f32.mrf.mxu0
  %v832 = vadd.f32 %v818, %v831
  %833 = vdwg.mxu0
  %834 = vmatpush.bf16.msra.mxu0 0
  %835 = vmatpush.bf16.msra.mxu0 0
  %836 = vmatpush.bf16.msra.mxu0 0
  %837 = vmatpush.bf16.msra.mxu0 0
  %838 = vmatpush.bf16.msra.mxu0 0
  %839 = vmatpush.bf16.msra.mxu0 0
  %840 = vmatpush.bf16.msra.mxu0 0
  %841 = vmatpush.bf16.msra.mxu0 %v549
  %842 = vmatmul.bf16.gmra.mxu0 %v650
  %v843 = vpop.f32.mrf.mxu0
  %v844 = vadd.f32 %v830, %v843
  %v845 = vpop.f32.mrf.mxu0
  %v846 = vadd.f32 %v832, %v845
  %847 = vdwg.mxu0
  %v848 = vmax.f32 %v746, 0.0
  %v849 = vmax.f32 %v844, 0.0
  %v850 = vmax.f32 %v748, 0.0
  %v851 = vmax.f32 %v846, 0.0
  %v852 = vpack.c.bf16 %v850, %v848
  %v853 = vpack.c.bf16 %v851, %v849
  %v854 = vld [vmem:[%s3] sm:$0xf]
  %v855 = vld [vmem:[%s3 + $0x4] sm:$0xf]
  %v856 = vld [vmem:[%s3 + $0x8] sm:$0xf]
  %v857 = vld [vmem:[%s3 + $0xc] sm:$0xf]
  %v858 = vld [vmem:[%s3 + $0x10] sm:$0xf]
  %v859 = vld [vmem:[%s3 + $0x14] sm:$0xf]
  %v860 = vld [vmem:[%s3 + $0x18] sm:$0xf]
  %v861 = vld [vmem:[%s3 + $0x1c] sm:$0xf]
  %v862 = vld [vmem:[%s3 + $0x20] sm:$0xf]
  %v863 = vld [vmem:[%s3 + $0x24] sm:$0xf]
  %v864 = vld [vmem:[%s3 + $0x28] sm:$0xf]
  %v865 = vld [vmem:[%s3 + $0x2c] sm:$0xf]
  %v866 = vld [vmem:[%s3 + $0x30] sm:$0xf]
  %v867 = vld [vmem:[%s3 + $0x34] sm:$0xf]
  %v868 = vld [vmem:[%s3 + $0x38] sm:$0xf]
  %v869 = vld [vmem:[%s3 + $0x3c] sm:$0xf]
  %v870 = vld [vmem:[%s3 + $0x40] sm:$0xf]
  %v871 = vld [vmem:[%s3 + $0x44] sm:$0xf]
  %v872 = vld [vmem:[%s3 + $0x48] sm:$0xf]
  %v873 = vld [vmem:[%s3 + $0x4c] sm:$0xf]
  %v874 = vld [vmem:[%s3 + $0x50] sm:$0xf]
  %v875 = vld [vmem:[%s3 + $0x54] sm:$0xf]
  %v876 = vld [vmem:[%s3 + $0x58] sm:$0xf]
  %v877 = vld [vmem:[%s3 + $0x5c] sm:$0xf]
  %v878 = vld [vmem:[%s3 + $0x60] sm:$0xf]
  %v879 = vld [vmem:[%s3 + $0x64] sm:$0xf]
  %v880 = vld [vmem:[%s3 + $0x68] sm:$0xf]
  %v881 = vld [vmem:[%s3 + $0x6c] sm:$0xf]
  %v882 = vld [vmem:[%s3 + $0x70] sm:$0xf]
  %v883 = vld [vmem:[%s3 + $0x74] sm:$0xf]
  %v884 = vld [vmem:[%s3 + $0x78] sm:$0xf]
  %v885 = vld [vmem:[%s3 + $0x7c] sm:$0xf]
  %v886 = vld [vmem:[%s4] sm:$0x1]
  %v888 = vperm.slane %v886, 0
  %v922 = vunpack.c.l.b16 %v854
  %v923 = vunpack.c.l.b16 %v855
  %v924 = vunpack.c.l.b16 %v856
  %v925 = vunpack.c.l.b16 %v857
  %v926 = vunpack.c.l.b16 %v858
  %v927 = vunpack.c.l.b16 %v859
  %v928 = vunpack.c.l.b16 %v860
  %v929 = vunpack.c.l.b16 %v861
  %v930 = vunpack.c.l.b16 %v862
  %v931 = vunpack.c.l.b16 %v863
  %v932 = vunpack.c.l.b16 %v864
  %v933 = vunpack.c.l.b16 %v865
  %v934 = vunpack.c.l.b16 %v866
  %v935 = vunpack.c.l.b16 %v867
  %v936 = vunpack.c.l.b16 %v868
  %v937 = vunpack.c.l.b16 %v869
  %v938 = vunpack.c.l.b16 %v870
  %v939 = vunpack.c.l.b16 %v871
  %v940 = vunpack.c.l.b16 %v872
  %v941 = vunpack.c.l.b16 %v873
  %v942 = vunpack.c.l.b16 %v874
  %v943 = vunpack.c.l.b16 %v875
  %v944 = vunpack.c.l.b16 %v876
  %v945 = vunpack.c.l.b16 %v877
  %v946 = vunpack.c.l.b16 %v878
  %v947 = vunpack.c.l.b16 %v879
  %v948 = vunpack.c.l.b16 %v880
  %v949 = vunpack.c.l.b16 %v881
  %v950 = vunpack.c.l.b16 %v882
  %v951 = vunpack.c.l.b16 %v883
  %v952 = vunpack.c.l.b16 %v884
  %v953 = vunpack.c.l.b16 %v885
  %v954 = vpack.c.b16 %v923, %v922
  %v955 = vpack.c.b16 %v925, %v924
  %v956 = vpack.c.b16 %v927, %v926
  %v957 = vpack.c.b16 %v929, %v928
  %v958 = vpack.c.b16 %v931, %v930
  %v959 = vpack.c.b16 %v933, %v932
  %v960 = vpack.c.b16 %v935, %v934
  %v961 = vpack.c.b16 %v937, %v936
  %v962 = vpack.c.b16 %v939, %v938
  %v963 = vpack.c.b16 %v941, %v940
  %v964 = vpack.c.b16 %v943, %v942
  %v965 = vpack.c.b16 %v945, %v944
  %v966 = vpack.c.b16 %v947, %v946
  %v967 = vpack.c.b16 %v949, %v948
  %v968 = vpack.c.b16 %v951, %v950
  %v969 = vpack.c.b16 %v953, %v952
  %986 = vmatpush.bf16.msra.mxu0 %v961
  %987 = vmatpush.bf16.msra.mxu0 %v960
  %988 = vmatpush.bf16.msra.mxu0 %v959
  %989 = vmatpush.bf16.msra.mxu0 %v958
  %990 = vmatpush.bf16.msra.mxu0 %v957
  %991 = vmatpush.bf16.msra.mxu0 %v956
  %992 = vmatpush.bf16.msra.mxu0 %v955
  %993 = vmatpush.bf16.msra.mxu0 %v954
  %994 = vmatmul.bf16.gmra.mxu0 %v852
  %v995 = vpop.f32.mrf.mxu0
  %v996 = vadd.f32 %v888, %v995
  %v997 = vpop.f32.mrf.mxu0
  %v998 = vadd.f32 %v888, %v997
  %999 = vdwg.mxu0
  %1000 = vmatpush.bf16.msra.mxu0 %v969
  %1001 = vmatpush.bf16.msra.mxu0 %v968
  %1002 = vmatpush.bf16.msra.mxu0 %v967
  %1003 = vmatpush.bf16.msra.mxu0 %v966
  %1004 = vmatpush.bf16.msra.mxu0 %v965
  %1005 = vmatpush.bf16.msra.mxu0 %v964
  %1006 = vmatpush.bf16.msra.mxu0 %v963
  %1007 = vmatpush.bf16.msra.mxu0 %v962
  %1008 = vmatmul.bf16.gmra.mxu0 %v853
  %v1009 = vpop.f32.mrf.mxu0
  %v1010 = vadd.f32 %v996, %v1009
  %v1011 = vpop.f32.mrf.mxu0
  %v1012 = vadd.f32 %v998, %v1011
  %1013 = vdwg.mxu0
  %v1014 = vmax.f32 %v1010, 0.0
  %v1015 = vmax.f32 %v1012, 0.0
  %v1016 = vpack.c.bf16 %v1015, %v1014
  %v1017 = vld [vmem:[%s5] sm:$0xff]
  %v1018 = vld [vmem:[%s5 + $0x8] sm:$0xff]
  %v1019 = vld [vmem:[%s5 + $0x10] sm:$0xff]
  %v1020 = vld [vmem:[%s5 + $0x18] sm:$0xff]
  %v1021 = vld [vmem:[%s5 + $0x20] sm:$0xff]
  %v1022 = vld [vmem:[%s5 + $0x28] sm:$0xff]
  %v1023 = vld [vmem:[%s5 + $0x30] sm:$0xff]
  %v1024 = vld [vmem:[%s5 + $0x38] sm:$0xff]
  %v1025 = vld [vmem:[%s5 + $0x40] sm:$0xff]
  %v1026 = vld [vmem:[%s5 + $0x48] sm:$0xff]
  %v1027 = vld [vmem:[%s5 + $0x50] sm:$0xff]
  %v1028 = vld [vmem:[%s5 + $0x58] sm:$0xff]
  %v1029 = vld [vmem:[%s5 + $0x60] sm:$0xff]
  %v1030 = vld [vmem:[%s5 + $0x68] sm:$0xff]
  %v1031 = vld [vmem:[%s5 + $0x70] sm:$0xff]
  %v1032 = vld [vmem:[%s5 + $0x78] sm:$0xff]
  %v1033 = vld [vmem:[%s6] sm:$0x3]
  %v1035 = vperm.slane %v1033, 0
  %v1036 = vperm.slane %v1033, 1
  %v1055 = vunpack.c.l.b16 %v1017
  %v1056 = vunpack.c.h.b16 %v1017
  %v1057 = vunpack.c.l.b16 %v1018
  %v1058 = vunpack.c.h.b16 %v1018
  %v1059 = vunpack.c.l.b16 %v1019
  %v1060 = vunpack.c.h.b16 %v1019
  %v1061 = vunpack.c.l.b16 %v1020
  %v1062 = vunpack.c.h.b16 %v1020
  %v1063 = vunpack.c.l.b16 %v1021
  %v1064 = vunpack.c.h.b16 %v1021
  %v1065 = vunpack.c.l.b16 %v1022
  %v1066 = vunpack.c.h.b16 %v1022
  %v1067 = vunpack.c.l.b16 %v1023
  %v1068 = vunpack.c.h.b16 %v1023
  %v1069 = vunpack.c.l.b16 %v1024
  %v1070 = vunpack.c.h.b16 %v1024
  %v1071 = vunpack.c.l.b16 %v1025
  %v1072 = vunpack.c.h.b16 %v1025
  %v1073 = vunpack.c.l.b16 %v1026
  %v1074 = vunpack.c.h.b16 %v1026
  %v1075 = vunpack.c.l.b16 %v1027
  %v1076 = vunpack.c.h.b16 %v1027
  %v1077 = vunpack.c.l.b16 %v1028
  %v1078 = vunpack.c.h.b16 %v1028
  %v1079 = vunpack.c.l.b16 %v1029
  %v1080 = vunpack.c.h.b16 %v1029
  %v1081 = vunpack.c.l.b16 %v1030
  %v1082 = vunpack.c.h.b16 %v1030
  %v1083 = vunpack.c.l.b16 %v1031
  %v1084 = vunpack.c.h.b16 %v1031
  %v1085 = vunpack.c.l.b16 %v1032
  %v1086 = vunpack.c.h.b16 %v1032
  %v1087 = vpack.c.b16 %v1057, %v1055
  %v1088 = vpack.c.b16 %v1058, %v1056
  %v1089 = vpack.c.b16 %v1061, %v1059
  %v1090 = vpack.c.b16 %v1062, %v1060
  %v1091 = vpack.c.b16 %v1065, %v1063
  %v1092 = vpack.c.b16 %v1066, %v1064
  %v1093 = vpack.c.b16 %v1069, %v1067
  %v1094 = vpack.c.b16 %v1070, %v1068
  %v1095 = vpack.c.b16 %v1073, %v1071
  %v1096 = vpack.c.b16 %v1074, %v1072
  %v1097 = vpack.c.b16 %v1077, %v1075
  %v1098 = vpack.c.b16 %v1078, %v1076
  %v1099 = vpack.c.b16 %v1081, %v1079
  %v1100 = vpack.c.b16 %v1082, %v1080
  %v1101 = vpack.c.b16 %v1085, %v1083
  %v1102 = vpack.c.b16 %v1086, %v1084
  %1119 = vmatpush.bf16.msra.mxu0 %v1101
  %1120 = vmatpush.bf16.msra.mxu0 %v1099
  %1121 = vmatpush.bf16.msra.mxu0 %v1097
  %1122 = vmatpush.bf16.msra.mxu0 %v1095
  %1123 = vmatpush.bf16.msra.mxu0 %v1093
  %1124 = vmatpush.bf16.msra.mxu0 %v1091
  %1125 = vmatpush.bf16.msra.mxu0 %v1089
  %1126 = vmatpush.bf16.msra.mxu0 %v1087
  %1127 = vmatmul.bf16.gmra.mxu0 %v1016
  %v1128 = vpop.f32.mrf.mxu0
  %v1129 = vadd.f32 %v1035, %v1128
  %v1130 = vpop.f32.mrf.mxu0
  %v1131 = vadd.f32 %v1035, %v1130
  %1132 = vdwg.mxu0
  %1133 = vmatpush.bf16.msra.mxu0 %v1102
  %1134 = vmatpush.bf16.msra.mxu0 %v1100
  %1135 = vmatpush.bf16.msra.mxu0 %v1098
  %1136 = vmatpush.bf16.msra.mxu0 %v1096
  %1137 = vmatpush.bf16.msra.mxu0 %v1094
  %1138 = vmatpush.bf16.msra.mxu0 %v1092
  %1139 = vmatpush.bf16.msra.mxu0 %v1090
  %1140 = vmatpush.bf16.msra.mxu0 %v1088
  %1141 = vmatmul.bf16.gmra.mxu0 %v1016
  %v1142 = vpop.f32.mrf.mxu0
  %v1143 = vadd.f32 %v1036, %v1142
  %v1144 = vpop.f32.mrf.mxu0
  %v1145 = vadd.f32 %v1036, %v1144
  %1146 = vdwg.mxu0
  %v1147 = vmax.f32 %v1129, 0.0
  %v1148 = vmax.f32 %v1143, 0.0
  %v1149 = vmax.f32 %v1131, 0.0
  %v1150 = vmax.f32 %v1145, 0.0
  %v1151 = vpack.c.bf16 %v1149, %v1147
  %v1152 = vpack.c.bf16 %v1150, %v1148
  %v1153 = vld [vmem:[%s7] sm:$0xff]
  %v1154 = vld [vmem:[%s7 + $0x8] sm:$0xff]
  %v1155 = vld [vmem:[%s7 + $0x10] sm:$0xff]
  %v1156 = vld [vmem:[%s7 + $0x18] sm:$0xf]
  %v1157 = vld [vmem:[%s7 + $0x1c] sm:$0xff]
  %v1158 = vld [vmem:[%s7 + $0x24] sm:$0xff]
  %v1159 = vld [vmem:[%s7 + $0x2c] sm:$0xff]
  %v1160 = vld [vmem:[%s7 + $0x34] sm:$0xf]
  %v1161 = vld [vmem:[%s7 + $0x38] sm:$0xff]
  %v1162 = vld [vmem:[%s7 + $0x40] sm:$0xff]
  %v1163 = vld [vmem:[%s7 + $0x48] sm:$0xff]
  %v1164 = vld [vmem:[%s7 + $0x50] sm:$0xf]
  %v1165 = vld [vmem:[%s7 + $0x54] sm:$0xff]
  %v1166 = vld [vmem:[%s7 + $0x5c] sm:$0xff]
  %v1167 = vld [vmem:[%s7 + $0x64] sm:$0xff]
  %v1168 = vld [vmem:[%s7 + $0x6c] sm:$0xf]
  %v1169 = vld [vmem:[%s7 + $0x70] sm:$0xff]
  %v1170 = vld [vmem:[%s7 + $0x78] sm:$0xff]
  %v1171 = vld [vmem:[%s7 + $0x80] sm:$0xff]
  %v1172 = vld [vmem:[%s7 + $0x88] sm:$0xf]
  %v1173 = vld [vmem:[%s7 + $0x8c] sm:$0xff]
  %v1174 = vld [vmem:[%s7 + $0x94] sm:$0xff]
  %v1175 = vld [vmem:[%s7 + $0x9c] sm:$0xff]
  %v1176 = vld [vmem:[%s7 + $0xa4] sm:$0xf]
  %v1177 = vld [vmem:[%s7 + $0xa8] sm:$0xff]
  %v1178 = vld [vmem:[%s7 + $0xb0] sm:$0xff]
  %v1179 = vld [vmem:[%s7 + $0xb8] sm:$0xff]
  %v1180 = vld [vmem:[%s7 + $0xc0] sm:$0xf]
  %v1181 = vld [vmem:[%s7 + $0xc4] sm:$0xff]
  %v1182 = vld [vmem:[%s7 + $0xcc] sm:$0xff]
  %v1183 = vld [vmem:[%s7 + $0xd4] sm:$0xff]
  %v1184 = vld [vmem:[%s7 + $0xdc] sm:$0xf]
  %v1185 = vld [vmem:[%s7 + $0xe0] sm:$0xff]
  %v1186 = vld [vmem:[%s7 + $0xe8] sm:$0xff]
  %v1187 = vld [vmem:[%s7 + $0xf0] sm:$0xff]
  %v1188 = vld [vmem:[%s7 + $0xf8] sm:$0xf]
  %v1189 = vld [vmem:[%s7 + $0xfc] sm:$0xff]
  %v1190 = vld [vmem:[%s7 + $0x104] sm:$0xff]
  %v1191 = vld [vmem:[%s7 + $0x10c] sm:$0xff]
  %v1192 = vld [vmem:[%s7 + $0x114] sm:$0xf]
  %v1193 = vld [vmem:[%s7 + $0x118] sm:$0xff]
  %v1194 = vld [vmem:[%s7 + $0x120] sm:$0xff]
  %v1195 = vld [vmem:[%s7 + $0x128] sm:$0xff]
  %v1196 = vld [vmem:[%s7 + $0x130] sm:$0xf]
  %v1197 = vld [vmem:[%s7 + $0x134] sm:$0xff]
  %v1198 = vld [vmem:[%s7 + $0x13c] sm:$0xff]
  %v1199 = vld [vmem:[%s7 + $0x144] sm:$0xff]
  %v1200 = vld [vmem:[%s7 + $0x14c] sm:$0xf]
  %v1201 = vld [vmem:[%s7 + $0x150] sm:$0xff]
  %v1202 = vld [vmem:[%s7 + $0x158] sm:$0xff]
  %v1203 = vld [vmem:[%s7 + $0x160] sm:$0xff]
  %v1204 = vld [vmem:[%s7 + $0x168] sm:$0xf]
  %v1205 = vld [vmem:[%s7 + $0x16c] sm:$0xff]
  %v1206 = vld [vmem:[%s7 + $0x174] sm:$0xff]
  %v1207 = vld [vmem:[%s7 + $0x17c] sm:$0xff]
  %v1208 = vld [vmem:[%s7 + $0x184] sm:$0xf]
  %v1209 = vld [vmem:[%s7 + $0x188] sm:$0xff]
  %v1210 = vld [vmem:[%s7 + $0x190] sm:$0xff]
  %v1211 = vld [vmem:[%s7 + $0x198] sm:$0xff]
  %v1212 = vld [vmem:[%s7 + $0x1a0] sm:$0xf]
  %v1213 = vld [vmem:[%s7 + $0x1a4] sm:$0xff]
  %v1214 = vld [vmem:[%s7 + $0x1ac] sm:$0xff]
  %v1215 = vld [vmem:[%s7 + $0x1b4] sm:$0xff]
  %v1216 = vld [vmem:[%s7 + $0x1bc] sm:$0xf]
  %v1217 = vld [vmem:[%s7 + $0x1c0] sm:$0xff]
  %v1218 = vld [vmem:[%s7 + $0x1c8] sm:$0xff]
  %v1219 = vld [vmem:[%s7 + $0x1d0] sm:$0xff]
  %v1220 = vld [vmem:[%s7 + $0x1d8] sm:$0xf]
  %v1221 = vld [vmem:[%s7 + $0x1dc] sm:$0xff]
  %v1222 = vld [vmem:[%s7 + $0x1e4] sm:$0xff]
  %v1223 = vld [vmem:[%s7 + $0x1ec] sm:$0xff]
  %v1224 = vld [vmem:[%s7 + $0x1f4] sm:$0xf]
  %v1225 = vld [vmem:[%s7 + $0x1f8] sm:$0xff]
  %v1226 = vld [vmem:[%s7 + $0x200] sm:$0xff]
  %v1227 = vld [vmem:[%s7 + $0x208] sm:$0xff]
  %v1228 = vld [vmem:[%s7 + $0x210] sm:$0xf]
  %v1229 = vld [vmem:[%s7 + $0x214] sm:$0xff]
  %v1230 = vld [vmem:[%s7 + $0x21c] sm:$0xff]
  %v1231 = vld [vmem:[%s7 + $0x224] sm:$0xff]
  %v1232 = vld [vmem:[%s7 + $0x22c] sm:$0xf]
  %v1233 = vld [vmem:[%s7 + $0x230] sm:$0xff]
  %v1234 = vld [vmem:[%s7 + $0x238] sm:$0xff]
  %v1235 = vld [vmem:[%s7 + $0x240] sm:$0xff]
  %v1236 = vld [vmem:[%s7 + $0x248] sm:$0xf]
  %v1237 = vld [vmem:[%s7 + $0x24c] sm:$0xff]
  %v1238 = vld [vmem:[%s7 + $0x254] sm:$0xff]
  %v1239 = vld [vmem:[%s7 + $0x25c] sm:$0xff]
  %v1240 = vld [vmem:[%s7 + $0x264] sm:$0xf]
  %v1241 = vld [vmem:[%s7 + $0x268] sm:$0xff]
  %v1242 = vld [vmem:[%s7 + $0x270] sm:$0xff]
  %v1243 = vld [vmem:[%s7 + $0x278] sm:$0xff]
  %v1244 = vld [vmem:[%s7 + $0x280] sm:$0xf]
  %v1245 = vld [vmem:[%s7 + $0x284] sm:$0xff]
  %v1246 = vld [vmem:[%s7 + $0x28c] sm:$0xff]
  %v1247 = vld [vmem:[%s7 + $0x294] sm:$0xff]
  %v1248 = vld [vmem:[%s7 + $0x29c] sm:$0xf]
  %v1249 = vld [vmem:[%s7 + $0x2a0] sm:$0xff]
  %v1250 = vld [vmem:[%s7 + $0x2a8] sm:$0xff]
  %v1251 = vld [vmem:[%s7 + $0x2b0] sm:$0xff]
  %v1252 = vld [vmem:[%s7 + $0x2b8] sm:$0xf]
  %v1253 = vld [vmem:[%s7 + $0x2bc] sm:$0xff]
  %v1254 = vld [vmem:[%s7 + $0x2c4] sm:$0xff]
  %v1255 = vld [vmem:[%s7 + $0x2cc] sm:$0xff]
  %v1256 = vld [vmem:[%s7 + $0x2d4] sm:$0xf]
  %v1257 = vld [vmem:[%s7 + $0x2d8] sm:$0xff]
  %v1258 = vld [vmem:[%s7 + $0x2e0] sm:$0xff]
  %v1259 = vld [vmem:[%s7 + $0x2e8] sm:$0xff]
  %v1260 = vld [vmem:[%s7 + $0x2f0] sm:$0xf]
  %v1261 = vld [vmem:[%s7 + $0x2f4] sm:$0xff]
  %v1262 = vld [vmem:[%s7 + $0x2fc] sm:$0xff]
  %v1263 = vld [vmem:[%s7 + $0x304] sm:$0xff]
  %v1264 = vld [vmem:[%s7 + $0x30c] sm:$0xf]
  %v1265 = vld [vmem:[%s7 + $0x310] sm:$0xff]
  %v1266 = vld [vmem:[%s7 + $0x318] sm:$0xff]
  %v1267 = vld [vmem:[%s7 + $0x320] sm:$0xff]
  %v1268 = vld [vmem:[%s7 + $0x328] sm:$0xf]
  %v1269 = vld [vmem:[%s7 + $0x32c] sm:$0xff]
  %v1270 = vld [vmem:[%s7 + $0x334] sm:$0xff]
  %v1271 = vld [vmem:[%s7 + $0x33c] sm:$0xff]
  %v1272 = vld [vmem:[%s7 + $0x344] sm:$0xf]
  %v1273 = vld [vmem:[%s7 + $0x348] sm:$0xff]
  %v1274 = vld [vmem:[%s7 + $0x350] sm:$0xff]
  %v1275 = vld [vmem:[%s7 + $0x358] sm:$0xff]
  %v1276 = vld [vmem:[%s7 + $0x360] sm:$0xf]
  %v1277 = vld [vmem:[%s7 + $0x364] sm:$0xff]
  %v1278 = vld [vmem:[%s7 + $0x36c] sm:$0xff]
  %v1279 = vld [vmem:[%s7 + $0x374] sm:$0xff]
  %v1280 = vld [vmem:[%s7 + $0x37c] sm:$0xf]
  %v1281 = vld [vmem:[%s8] sm:$0x7f]
  %v1283 = vperm.slane %v1281, 0
  %v1284 = vperm.slane %v1281, 1
  %v1285 = vperm.slane %v1281, 2
  %v1286 = vperm.slane %v1281, 3
  %v1287 = vperm.slane %v1281, 4
  %v1288 = vperm.slane %v1281, 5
  %v1289 = vperm.slane %v1281, 6
  %v1425 = vunpack.c.l.b16 %v1153
  %v1426 = vunpack.c.h.b16 %v1153
  %v1427 = vunpack.c.l.b16 %v1154
  %v1428 = vunpack.c.h.b16 %v1154
  %v1429 = vunpack.c.l.b16 %v1155
  %v1430 = vunpack.c.h.b16 %v1155
  %v1431 = vunpack.c.l.b16 %v1156
  %v1432 = vunpack.c.l.b16 %v1157
  %v1433 = vunpack.c.h.b16 %v1157
  %v1434 = vunpack.c.l.b16 %v1158
  %v1435 = vunpack.c.h.b16 %v1158
  %v1436 = vunpack.c.l.b16 %v1159
  %v1437 = vunpack.c.h.b16 %v1159
  %v1438 = vunpack.c.l.b16 %v1160
  %v1439 = vunpack.c.l.b16 %v1161
  %v1440 = vunpack.c.h.b16 %v1161
  %v1441 = vunpack.c.l.b16 %v1162
  %v1442 = vunpack.c.h.b16 %v1162
  %v1443 = vunpack.c.l.b16 %v1163
  %v1444 = vunpack.c.h.b16 %v1163
  %v1445 = vunpack.c.l.b16 %v1164
  %v1446 = vunpack.c.l.b16 %v1165
  %v1447 = vunpack.c.h.b16 %v1165
  %v1448 = vunpack.c.l.b16 %v1166
  %v1449 = vunpack.c.h.b16 %v1166
  %v1450 = vunpack.c.l.b16 %v1167
  %v1451 = vunpack.c.h.b16 %v1167
  %v1452 = vunpack.c.l.b16 %v1168
  %v1453 = vunpack.c.l.b16 %v1169
  %v1454 = vunpack.c.h.b16 %v1169
  %v1455 = vunpack.c.l.b16 %v1170
  %v1456 = vunpack.c.h.b16 %v1170
  %v1457 = vunpack.c.l.b16 %v1171
  %v1458 = vunpack.c.h.b16 %v1171
  %v1459 = vunpack.c.l.b16 %v1172
  %v1460 = vunpack.c.l.b16 %v1173
  %v1461 = vunpack.c.h.b16 %v1173
  %v1462 = vunpack.c.l.b16 %v1174
  %v1463 = vunpack.c.h.b16 %v1174
  %v1464 = vunpack.c.l.b16 %v1175
  %v1465 = vunpack.c.h.b16 %v1175
  %v1466 = vunpack.c.l.b16 %v1176
  %v1467 = vunpack.c.l.b16 %v1177
  %v1468 = vunpack.c.h.b16 %v1177
  %v1469 = vunpack.c.l.b16 %v1178
  %v1470 = vunpack.c.h.b16 %v1178
  %v1471 = vunpack.c.l.b16 %v1179
  %v1472 = vunpack.c.h.b16 %v1179
  %v1473 = vunpack.c.l.b16 %v1180
  %v1474 = vunpack.c.l.b16 %v1181
  %v1475 = vunpack.c.h.b16 %v1181
  %v1476 = vunpack.c.l.b16 %v1182
  %v1477 = vunpack.c.h.b16 %v1182
  %v1478 = vunpack.c.l.b16 %v1183
  %v1479 = vunpack.c.h.b16 %v1183
  %v1480 = vunpack.c.l.b16 %v1184
  %v1481 = vunpack.c.l.b16 %v1185
  %v1482 = vunpack.c.h.b16 %v1185
  %v1483 = vunpack.c.l.b16 %v1186
  %v1484 = vunpack.c.h.b16 %v1186
  %v1485 = vunpack.c.l.b16 %v1187
  %v1486 = vunpack.c.h.b16 %v1187
  %v1487 = vunpack.c.l.b16 %v1188
  %v1488 = vunpack.c.l.b16 %v1189
  %v1489 = vunpack.c.h.b16 %v1189
  %v1490 = vunpack.c.l.b16 %v1190
  %v1491 = vunpack.c.h.b16 %v1190
  %v1492 = vunpack.c.l.b16 %v1191
  %v1493 = vunpack.c.h.b16 %v1191
  %v1494 = vunpack.c.l.b16 %v1192
  %v1495 = vunpack.c.l.b16 %v1193
  %v1496 = vunpack.c.h.b16 %v1193
  %v1497 = vunpack.c.l.b16 %v1194
  %v1498 = vunpack.c.h.b16 %v1194
  %v1499 = vunpack.c.l.b16 %v1195
  %v1500 = vunpack.c.h.b16 %v1195
  %v1501 = vunpack.c.l.b16 %v1196
  %v1502 = vunpack.c.l.b16 %v1197
  %v1503 = vunpack.c.h.b16 %v1197
  %v1504 = vunpack.c.l.b16 %v1198
  %v1505 = vunpack.c.h.b16 %v1198
  %v1506 = vunpack.c.l.b16 %v1199
  %v1507 = vunpack.c.h.b16 %v1199
  %v1508 = vunpack.c.l.b16 %v1200
  %v1509 = vunpack.c.l.b16 %v1201
  %v1510 = vunpack.c.h.b16 %v1201
  %v1511 = vunpack.c.l.b16 %v1202
  %v1512 = vunpack.c.h.b16 %v1202
  %v1513 = vunpack.c.l.b16 %v1203
  %v1514 = vunpack.c.h.b16 %v1203
  %v1515 = vunpack.c.l.b16 %v1204
  %v1516 = vunpack.c.l.b16 %v1205
  %v1517 = vunpack.c.h.b16 %v1205
  %v1518 = vunpack.c.l.b16 %v1206
  %v1519 = vunpack.c.h.b16 %v1206
  %v1520 = vunpack.c.l.b16 %v1207
  %v1521 = vunpack.c.h.b16 %v1207
  %v1522 = vunpack.c.l.b16 %v1208
  %v1523 = vunpack.c.l.b16 %v1209
  %v1524 = vunpack.c.h.b16 %v1209
  %v1525 = vunpack.c.l.b16 %v1210
  %v1526 = vunpack.c.h.b16 %v1210
  %v1527 = vunpack.c.l.b16 %v1211
  %v1528 = vunpack.c.h.b16 %v1211
  %v1529 = vunpack.c.l.b16 %v1212
  %v1530 = vunpack.c.l.b16 %v1213
  %v1531 = vunpack.c.h.b16 %v1213
  %v1532 = vunpack.c.l.b16 %v1214
  %v1533 = vunpack.c.h.b16 %v1214
  %v1534 = vunpack.c.l.b16 %v1215
  %v1535 = vunpack.c.h.b16 %v1215
  %v1536 = vunpack.c.l.b16 %v1216
  %v1537 = vunpack.c.l.b16 %v1217
  %v1538 = vunpack.c.h.b16 %v1217
  %v1539 = vunpack.c.l.b16 %v1218
  %v1540 = vunpack.c.h.b16 %v1218
  %v1541 = vunpack.c.l.b16 %v1219
  %v1542 = vunpack.c.h.b16 %v1219
  %v1543 = vunpack.c.l.b16 %v1220
  %v1544 = vunpack.c.l.b16 %v1221
  %v1545 = vunpack.c.h.b16 %v1221
  %v1546 = vunpack.c.l.b16 %v1222
  %v1547 = vunpack.c.h.b16 %v1222
  %v1548 = vunpack.c.l.b16 %v1223
  %v1549 = vunpack.c.h.b16 %v1223
  %v1550 = vunpack.c.l.b16 %v1224
  %v1551 = vunpack.c.l.b16 %v1225
  %v1552 = vunpack.c.h.b16 %v1225
  %v1553 = vunpack.c.l.b16 %v1226
  %v1554 = vunpack.c.h.b16 %v1226
  %v1555 = vunpack.c.l.b16 %v1227
  %v1556 = vunpack.c.h.b16 %v1227
  %v1557 = vunpack.c.l.b16 %v1228
  %v1558 = vunpack.c.l.b16 %v1229
  %v1559 = vunpack.c.h.b16 %v1229
  %v1560 = vunpack.c.l.b16 %v1230
  %v1561 = vunpack.c.h.b16 %v1230
  %v1562 = vunpack.c.l.b16 %v1231
  %v1563 = vunpack.c.h.b16 %v1231
  %v1564 = vunpack.c.l.b16 %v1232
  %v1565 = vunpack.c.l.b16 %v1233
  %v1566 = vunpack.c.h.b16 %v1233
  %v1567 = vunpack.c.l.b16 %v1234
  %v1568 = vunpack.c.h.b16 %v1234
  %v1569 = vunpack.c.l.b16 %v1235
  %v1570 = vunpack.c.h.b16 %v1235
  %v1571 = vunpack.c.l.b16 %v1236
  %v1572 = vunpack.c.l.b16 %v1237
  %v1573 = vunpack.c.h.b16 %v1237
  %v1574 = vunpack.c.l.b16 %v1238
  %v1575 = vunpack.c.h.b16 %v1238
  %v1576 = vunpack.c.l.b16 %v1239
  %v1577 = vunpack.c.h.b16 %v1239
  %v1578 = vunpack.c.l.b16 %v1240
  %v1579 = vunpack.c.l.b16 %v1241
  %v1580 = vunpack.c.h.b16 %v1241
  %v1581 = vunpack.c.l.b16 %v1242
  %v1582 = vunpack.c.h.b16 %v1242
  %v1583 = vunpack.c.l.b16 %v1243
  %v1584 = vunpack.c.h.b16 %v1243
  %v1585 = vunpack.c.l.b16 %v1244
  %v1586 = vunpack.c.l.b16 %v1245
  %v1587 = vunpack.c.h.b16 %v1245
  %v1588 = vunpack.c.l.b16 %v1246
  %v1589 = vunpack.c.h.b16 %v1246
  %v1590 = vunpack.c.l.b16 %v1247
  %v1591 = vunpack.c.h.b16 %v1247
  %v1592 = vunpack.c.l.b16 %v1248
  %v1593 = vunpack.c.l.b16 %v1249
  %v1594 = vunpack.c.h.b16 %v1249
  %v1595 = vunpack.c.l.b16 %v1250
  %v1596 = vunpack.c.h.b16 %v1250
  %v1597 = vunpack.c.l.b16 %v1251
  %v1598 = vunpack.c.h.b16 %v1251
  %v1599 = vunpack.c.l.b16 %v1252
  %v1600 = vunpack.c.l.b16 %v1253
  %v1601 = vunpack.c.h.b16 %v1253
  %v1602 = vunpack.c.l.b16 %v1254
  %v1603 = vunpack.c.h.b16 %v1254
  %v1604 = vunpack.c.l.b16 %v1255
  %v1605 = vunpack.c.h.b16 %v1255
  %v1606 = vunpack.c.l.b16 %v1256
  %v1607 = vunpack.c.l.b16 %v1257
  %v1608 = vunpack.c.h.b16 %v1257
  %v1609 = vunpack.c.l.b16 %v1258
  %v1610 = vunpack.c.h.b16 %v1258
  %v1611 = vunpack.c.l.b16 %v1259
  %v1612 = vunpack.c.h.b16 %v1259
  %v1613 = vunpack.c.l.b16 %v1260
  %v1614 = vunpack.c.l.b16 %v1261
  %v1615 = vunpack.c.h.b16 %v1261
  %v1616 = vunpack.c.l.b16 %v1262
  %v1617 = vunpack.c.h.b16 %v1262
  %v1618 = vunpack.c.l.b16 %v1263
  %v1619 = vunpack.c.h.b16 %v1263
  %v1620 = vunpack.c.l.b16 %v1264
  %v1621 = vunpack.c.l.b16 %v1265
  %v1622 = vunpack.c.h.b16 %v1265
  %v1623 = vunpack.c.l.b16 %v1266
  %v1624 = vunpack.c.h.b16 %v1266
  %v1625 = vunpack.c.l.b16 %v1267
  %v1626 = vunpack.c.h.b16 %v1267
  %v1627 = vunpack.c.l.b16 %v1268
  %v1628 = vunpack.c.l.b16 %v1269
  %v1629 = vunpack.c.h.b16 %v1269
  %v1630 = vunpack.c.l.b16 %v1270
  %v1631 = vunpack.c.h.b16 %v1270
  %v1632 = vunpack.c.l.b16 %v1271
  %v1633 = vunpack.c.h.b16 %v1271
  %v1634 = vunpack.c.l.b16 %v1272
  %v1635 = vunpack.c.l.b16 %v1273
  %v1636 = vunpack.c.h.b16 %v1273
  %v1637 = vunpack.c.l.b16 %v1274
  %v1638 = vunpack.c.h.b16 %v1274
  %v1639 = vunpack.c.l.b16 %v1275
  %v1640 = vunpack.c.h.b16 %v1275
  %v1641 = vunpack.c.l.b16 %v1276
  %v1642 = vunpack.c.l.b16 %v1277
  %v1643 = vunpack.c.h.b16 %v1277
  %v1644 = vunpack.c.l.b16 %v1278
  %v1645 = vunpack.c.h.b16 %v1278
  %v1646 = vunpack.c.l.b16 %v1279
  %v1647 = vunpack.c.h.b16 %v1279
  %v1648 = vunpack.c.l.b16 %v1280
  %v1649 = vpack.c.b16 %v1432, %v1425
  %v1650 = vpack.c.b16 %v1433, %v1426
  %v1651 = vpack.c.b16 %v1434, %v1427
  %v1652 = vpack.c.b16 %v1435, %v1428
  %v1653 = vpack.c.b16 %v1436, %v1429
  %v1654 = vpack.c.b16 %v1437, %v1430
  %v1655 = vpack.c.b16 %v1438, %v1431
  %v1656 = vpack.c.b16 %v1446, %v1439
  %v1657 = vpack.c.b16 %v1447, %v1440
  %v1658 = vpack.c.b16 %v1448, %v1441
  %v1659 = vpack.c.b16 %v1449, %v1442
  %v1660 = vpack.c.b16 %v1450, %v1443
  %v1661 = vpack.c.b16 %v1451, %v1444
  %v1662 = vpack.c.b16 %v1452, %v1445
  %v1663 = vpack.c.b16 %v1460, %v1453
  %v1664 = vpack.c.b16 %v1461, %v1454
  %v1665 = vpack.c.b16 %v1462, %v1455
  %v1666 = vpack.c.b16 %v1463, %v1456
  %v1667 = vpack.c.b16 %v1464, %v1457
  %v1668 = vpack.c.b16 %v1465, %v1458
  %v1669 = vpack.c.b16 %v1466, %v1459
  %v1670 = vpack.c.b16 %v1474, %v1467
  %v1671 = vpack.c.b16 %v1475, %v1468
  %v1672 = vpack.c.b16 %v1476, %v1469
  %v1673 = vpack.c.b16 %v1477, %v1470
  %v1674 = vpack.c.b16 %v1478, %v1471
  %v1675 = vpack.c.b16 %v1479, %v1472
  %v1676 = vpack.c.b16 %v1480, %v1473
  %v1677 = vpack.c.b16 %v1488, %v1481
  %v1678 = vpack.c.b16 %v1489, %v1482
  %v1679 = vpack.c.b16 %v1490, %v1483
  %v1680 = vpack.c.b16 %v1491, %v1484
  %v1681 = vpack.c.b16 %v1492, %v1485
  %v1682 = vpack.c.b16 %v1493, %v1486
  %v1683 = vpack.c.b16 %v1494, %v1487
  %v1684 = vpack.c.b16 %v1502, %v1495
  %v1685 = vpack.c.b16 %v1503, %v1496
  %v1686 = vpack.c.b16 %v1504, %v1497
  %v1687 = vpack.c.b16 %v1505, %v1498
  %v1688 = vpack.c.b16 %v1506, %v1499
  %v1689 = vpack.c.b16 %v1507, %v1500
  %v1690 = vpack.c.b16 %v1508, %v1501
  %v1691 = vpack.c.b16 %v1516, %v1509
  %v1692 = vpack.c.b16 %v1517, %v1510
  %v1693 = vpack.c.b16 %v1518, %v1511
  %v1694 = vpack.c.b16 %v1519, %v1512
  %v1695 = vpack.c.b16 %v1520, %v1513
  %v1696 = vpack.c.b16 %v1521, %v1514
  %v1697 = vpack.c.b16 %v1522, %v1515
  %v1698 = vpack.c.b16 %v1530, %v1523
  %v1699 = vpack.c.b16 %v1531, %v1524
  %v1700 = vpack.c.b16 %v1532, %v1525
  %v1701 = vpack.c.b16 %v1533, %v1526
  %v1702 = vpack.c.b16 %v1534, %v1527
  %v1703 = vpack.c.b16 %v1535, %v1528
  %v1704 = vpack.c.b16 %v1536, %v1529
  %v1705 = vpack.c.b16 %v1544, %v1537
  %v1706 = vpack.c.b16 %v1545, %v1538
  %v1707 = vpack.c.b16 %v1546, %v1539
  %v1708 = vpack.c.b16 %v1547, %v1540
  %v1709 = vpack.c.b16 %v1548, %v1541
  %v1710 = vpack.c.b16 %v1549, %v1542
  %v1711 = vpack.c.b16 %v1550, %v1543
  %v1712 = vpack.c.b16 %v1558, %v1551
  %v1713 = vpack.c.b16 %v1559, %v1552
  %v1714 = vpack.c.b16 %v1560, %v1553
  %v1715 = vpack.c.b16 %v1561, %v1554
  %v1716 = vpack.c.b16 %v1562, %v1555
  %v1717 = vpack.c.b16 %v1563, %v1556
  %v1718 = vpack.c.b16 %v1564, %v1557
  %v1719 = vpack.c.b16 %v1572, %v1565
  %v1720 = vpack.c.b16 %v1573, %v1566
  %v1721 = vpack.c.b16 %v1574, %v1567
  %v1722 = vpack.c.b16 %v1575, %v1568
  %v1723 = vpack.c.b16 %v1576, %v1569
  %v1724 = vpack.c.b16 %v1577, %v1570
  %v1725 = vpack.c.b16 %v1578, %v1571
  %v1726 = vpack.c.b16 %v1586, %v1579
  %v1727 = vpack.c.b16 %v1587, %v1580
  %v1728 = vpack.c.b16 %v1588, %v1581
  %v1729 = vpack.c.b16 %v1589, %v1582
  %v1730 = vpack.c.b16 %v1590, %v1583
  %v1731 = vpack.c.b16 %v1591, %v1584
  %v1732 = vpack.c.b16 %v1592, %v1585
  %v1733 = vpack.c.b16 %v1600, %v1593
  %v1734 = vpack.c.b16 %v1601, %v1594
  %v1735 = vpack.c.b16 %v1602, %v1595
  %v1736 = vpack.c.b16 %v1603, %v1596
  %v1737 = vpack.c.b16 %v1604, %v1597
  %v1738 = vpack.c.b16 %v1605, %v1598
  %v1739 = vpack.c.b16 %v1606, %v1599
  %v1740 = vpack.c.b16 %v1614, %v1607
  %v1741 = vpack.c.b16 %v1615, %v1608
  %v1742 = vpack.c.b16 %v1616, %v1609
  %v1743 = vpack.c.b16 %v1617, %v1610
  %v1744 = vpack.c.b16 %v1618, %v1611
  %v1745 = vpack.c.b16 %v1619, %v1612
  %v1746 = vpack.c.b16 %v1620, %v1613
  %v1747 = vpack.c.b16 %v1628, %v1621
  %v1748 = vpack.c.b16 %v1629, %v1622
  %v1749 = vpack.c.b16 %v1630, %v1623
  %v1750 = vpack.c.b16 %v1631, %v1624
  %v1751 = vpack.c.b16 %v1632, %v1625
  %v1752 = vpack.c.b16 %v1633, %v1626
  %v1753 = vpack.c.b16 %v1634, %v1627
  %v1754 = vpack.c.b16 %v1642, %v1635
  %v1755 = vpack.c.b16 %v1643, %v1636
  %v1756 = vpack.c.b16 %v1644, %v1637
  %v1757 = vpack.c.b16 %v1645, %v1638
  %v1758 = vpack.c.b16 %v1646, %v1639
  %v1759 = vpack.c.b16 %v1647, %v1640
  %v1760 = vpack.c.b16 %v1648, %v1641
  %1873 = vmatpush.bf16.msra.mxu0 %v1698
  %1874 = vmatpush.bf16.msra.mxu0 %v1691
  %1875 = vmatpush.bf16.msra.mxu0 %v1684
  %1876 = vmatpush.bf16.msra.mxu0 %v1677
  %1877 = vmatpush.bf16.msra.mxu0 %v1670
  %1878 = vmatpush.bf16.msra.mxu0 %v1663
  %1879 = vmatpush.bf16.msra.mxu0 %v1656
  %1880 = vmatpush.bf16.msra.mxu0 %v1649
  %1881 = vmatmul.bf16.gmra.mxu0 %v1151
  %v1882 = vpop.f32.mrf.mxu0
  %v1883 = vadd.f32 %v1283, %v1882
  %v1884 = vpop.f32.mrf.mxu0
  %v1885 = vadd.f32 %v1283, %v1884
  %1886 = vdwg.mxu0
  %1887 = vmatpush.bf16.msra.mxu0 %v1754
  %1888 = vmatpush.bf16.msra.mxu0 %v1747
  %1889 = vmatpush.bf16.msra.mxu0 %v1740
  %1890 = vmatpush.bf16.msra.mxu0 %v1733
  %1891 = vmatpush.bf16.msra.mxu0 %v1726
  %1892 = vmatpush.bf16.msra.mxu0 %v1719
  %1893 = vmatpush.bf16.msra.mxu0 %v1712
  %1894 = vmatpush.bf16.msra.mxu0 %v1705
  %1895 = vmatmul.bf16.gmra.mxu0 %v1152
  %v1896 = vpop.f32.mrf.mxu0
  %v1897 = vadd.f32 %v1883, %v1896
  %v1898 = vpop.f32.mrf.mxu0
  %v1899 = vadd.f32 %v1885, %v1898
  %1900 = vdwg.mxu0
  %1901 = vmatpush.bf16.msra.mxu0 %v1699
  %1902 = vmatpush.bf16.msra.mxu0 %v1692
  %1903 = vmatpush.bf16.msra.mxu0 %v1685
  %1904 = vmatpush.bf16.msra.mxu0 %v1678
  %1905 = vmatpush.bf16.msra.mxu0 %v1671
  %1906 = vmatpush.bf16.msra.mxu0 %v1664
  %1907 = vmatpush.bf16.msra.mxu0 %v1657
  %1908 = vmatpush.bf16.msra.mxu0 %v1650
  %1909 = vmatmul.bf16.gmra.mxu0 %v1151
  %v1910 = vpop.f32.mrf.mxu0
  %v1911 = vadd.f32 %v1284, %v1910
  %v1912 = vpop.f32.mrf.mxu0
  %v1913 = vadd.f32 %v1284, %v1912
  %1914 = vdwg.mxu0
  %1915 = vmatpush.bf16.msra.mxu0 %v1755
  %1916 = vmatpush.bf16.msra.mxu0 %v1748
  %1917 = vmatpush.bf16.msra.mxu0 %v1741
  %1918 = vmatpush.bf16.msra.mxu0 %v1734
  %1919 = vmatpush.bf16.msra.mxu0 %v1727
  %1920 = vmatpush.bf16.msra.mxu0 %v1720
  %1921 = vmatpush.bf16.msra.mxu0 %v1713
  %1922 = vmatpush.bf16.msra.mxu0 %v1706
  %1923 = vmatmul.bf16.gmra.mxu0 %v1152
  %v1924 = vpop.f32.mrf.mxu0
  %v1925 = vadd.f32 %v1911, %v1924
  %v1926 = vpop.f32.mrf.mxu0
  %v1927 = vadd.f32 %v1913, %v1926
  %1928 = vdwg.mxu0
  %1929 = vmatpush.bf16.msra.mxu0 %v1700
  %1930 = vmatpush.bf16.msra.mxu0 %v1693
  %1931 = vmatpush.bf16.msra.mxu0 %v1686
  %1932 = vmatpush.bf16.msra.mxu0 %v1679
  %1933 = vmatpush.bf16.msra.mxu0 %v1672
  %1934 = vmatpush.bf16.msra.mxu0 %v1665
  %1935 = vmatpush.bf16.msra.mxu0 %v1658
  %1936 = vmatpush.bf16.msra.mxu0 %v1651
  %1937 = vmatmul.bf16.gmra.mxu0 %v1151
  %v1938 = vpop.f32.mrf.mxu0
  %v1939 = vadd.f32 %v1285, %v1938
  %v1940 = vpop.f32.mrf.mxu0
  %v1941 = vadd.f32 %v1285, %v1940
  %1942 = vdwg.mxu0
  %1943 = vmatpush.bf16.msra.mxu0 %v1756
  %1944 = vmatpush.bf16.msra.mxu0 %v1749
  %1945 = vmatpush.bf16.msra.mxu0 %v1742
  %1946 = vmatpush.bf16.msra.mxu0 %v1735
  %1947 = vmatpush.bf16.msra.mxu0 %v1728
  %1948 = vmatpush.bf16.msra.mxu0 %v1721
  %1949 = vmatpush.bf16.msra.mxu0 %v1714
  %1950 = vmatpush.bf16.msra.mxu0 %v1707
  %1951 = vmatmul.bf16.gmra.mxu0 %v1152
  %v1952 = vpop.f32.mrf.mxu0
  %v1953 = vadd.f32 %v1939, %v1952
  %v1954 = vpop.f32.mrf.mxu0
  %v1955 = vadd.f32 %v1941, %v1954
  %1956 = vdwg.mxu0
  %1957 = vmatpush.bf16.msra.mxu0 %v1701
  %1958 = vmatpush.bf16.msra.mxu0 %v1694
  %1959 = vmatpush.bf16.msra.mxu0 %v1687
  %1960 = vmatpush.bf16.msra.mxu0 %v1680
  %1961 = vmatpush.bf16.msra.mxu0 %v1673
  %1962 = vmatpush.bf16.msra.mxu0 %v1666
  %1963 = vmatpush.bf16.msra.mxu0 %v1659
  %1964 = vmatpush.bf16.msra.mxu0 %v1652
  %1965 = vmatmul.bf16.gmra.mxu0 %v1151
  %v1966 = vpop.f32.mrf.mxu0
  %v1967 = vadd.f32 %v1286, %v1966
  %v1968 = vpop.f32.mrf.mxu0
  %v1969 = vadd.f32 %v1286, %v1968
  %1970 = vdwg.mxu0
  %1971 = vmatpush.bf16.msra.mxu0 %v1757
  %1972 = vmatpush.bf16.msra.mxu0 %v1750
  %1973 = vmatpush.bf16.msra.mxu0 %v1743
  %1974 = vmatpush.bf16.msra.mxu0 %v1736
  %1975 = vmatpush.bf16.msra.mxu0 %v1729
  %1976 = vmatpush.bf16.msra.mxu0 %v1722
  %1977 = vmatpush.bf16.msra.mxu0 %v1715
  %1978 = vmatpush.bf16.msra.mxu0 %v1708
  %1979 = vmatmul.bf16.gmra.mxu0 %v1152
  %v1980 = vpop.f32.mrf.mxu0
  %v1981 = vadd.f32 %v1967, %v1980
  %v1982 = vpop.f32.mrf.mxu0
  %v1983 = vadd.f32 %v1969, %v1982
  %1984 = vdwg.mxu0
  %1985 = vmatpush.bf16.msra.mxu0 %v1702
  %1986 = vmatpush.bf16.msra.mxu0 %v1695
  %1987 = vmatpush.bf16.msra.mxu0 %v1688
  %1988 = vmatpush.bf16.msra.mxu0 %v1681
  %1989 = vmatpush.bf16.msra.mxu0 %v1674
  %1990 = vmatpush.bf16.msra.mxu0 %v1667
  %1991 = vmatpush.bf16.msra.mxu0 %v1660
  %1992 = vmatpush.bf16.msra.mxu0 %v1653
  %1993 = vmatmul.bf16.gmra.mxu0 %v1151
  %v1994 = vpop.f32.mrf.mxu0
  %v1995 = vadd.f32 %v1287, %v1994
  %v1996 = vpop.f32.mrf.mxu0
  %v1997 = vadd.f32 %v1287, %v1996
  %1998 = vdwg.mxu0
  %1999 = vmatpush.bf16.msra.mxu0 %v1758
  %2000 = vmatpush.bf16.msra.mxu0 %v1751
  %2001 = vmatpush.bf16.msra.mxu0 %v1744
  %2002 = vmatpush.bf16.msra.mxu0 %v1737
  %2003 = vmatpush.bf16.msra.mxu0 %v1730
  %2004 = vmatpush.bf16.msra.mxu0 %v1723
  %2005 = vmatpush.bf16.msra.mxu0 %v1716
  %2006 = vmatpush.bf16.msra.mxu0 %v1709
  %2007 = vmatmul.bf16.gmra.mxu0 %v1152
  %v2008 = vpop.f32.mrf.mxu0
  %v2009 = vadd.f32 %v1995, %v2008
  %v2010 = vpop.f32.mrf.mxu0
  %v2011 = vadd.f32 %v1997, %v2010
  %2012 = vdwg.mxu0
  %2013 = vmatpush.bf16.msra.mxu0 %v1703
  %2014 = vmatpush.bf16.msra.mxu0 %v1696
  %2015 = vmatpush.bf16.msra.mxu0 %v1689
  %2016 = vmatpush.bf16.msra.mxu0 %v1682
  %2017 = vmatpush.bf16.msra.mxu0 %v1675
  %2018 = vmatpush.bf16.msra.mxu0 %v1668
  %2019 = vmatpush.bf16.msra.mxu0 %v1661
  %2020 = vmatpush.bf16.msra.mxu0 %v1654
  %2021 = vmatmul.bf16.gmra.mxu0 %v1151
  %v2022 = vpop.f32.mrf.mxu0
  %v2023 = vadd.f32 %v1288, %v2022
  %v2024 = vpop.f32.mrf.mxu0
  %v2025 = vadd.f32 %v1288, %v2024
  %2026 = vdwg.mxu0
  %2027 = vmatpush.bf16.msra.mxu0 %v1759
  %2028 = vmatpush.bf16.msra.mxu0 %v1752
  %2029 = vmatpush.bf16.msra.mxu0 %v1745
  %2030 = vmatpush.bf16.msra.mxu0 %v1738
  %2031 = vmatpush.bf16.msra.mxu0 %v1731
  %2032 = vmatpush.bf16.msra.mxu0 %v1724
  %2033 = vmatpush.bf16.msra.mxu0 %v1717
  %2034 = vmatpush.bf16.msra.mxu0 %v1710
  %2035 = vmatmul.bf16.gmra.mxu0 %v1152
  %v2036 = vpop.f32.mrf.mxu0
  %v2037 = vadd.f32 %v2023, %v2036
  %v2038 = vpop.f32.mrf.mxu0
  %v2039 = vadd.f32 %v2025, %v2038
  %2040 = vdwg.mxu0
  %2041 = vmatpush.bf16.msra.mxu0 %v1704
  %2042 = vmatpush.bf16.msra.mxu0 %v1697
  %2043 = vmatpush.bf16.msra.mxu0 %v1690
  %2044 = vmatpush.bf16.msra.mxu0 %v1683
  %2045 = vmatpush.bf16.msra.mxu0 %v1676
  %2046 = vmatpush.bf16.msra.mxu0 %v1669
  %2047 = vmatpush.bf16.msra.mxu0 %v1662
  %2048 = vmatpush.bf16.msra.mxu0 %v1655
  %2049 = vmatmul.bf16.gmra.mxu0 %v1151
  %v2050 = vpop.f32.mrf.mxu0
  %v2051 = vadd.f32 %v1289, %v2050
  %v2052 = vpop.f32.mrf.mxu0
  %v2053 = vadd.f32 %v1289, %v2052
  %2054 = vdwg.mxu0
  %2055 = vmatpush.bf16.msra.mxu0 %v1760
  %2056 = vmatpush.bf16.msra.mxu0 %v1753
  %2057 = vmatpush.bf16.msra.mxu0 %v1746
  %2058 = vmatpush.bf16.msra.mxu0 %v1739
  %2059 = vmatpush.bf16.msra.mxu0 %v1732
  %2060 = vmatpush.bf16.msra.mxu0 %v1725
  %2061 = vmatpush.bf16.msra.mxu0 %v1718
  %2062 = vmatpush.bf16.msra.mxu0 %v1711
  %2063 = vmatmul.bf16.gmra.mxu0 %v1152
  %v2064 = vpop.f32.mrf.mxu0
  %v2065 = vadd.f32 %v2051, %v2064
  %v2066 = vpop.f32.mrf.mxu0
  %v2067 = vadd.f32 %v2053, %v2066
  %2068 = vdwg.mxu0
  %v2069 = vmax.f32 %v1897, 0.0
  %v2070 = vmax.f32 %v1925, 0.0
  %v2071 = vmax.f32 %v1953, 0.0
  %v2072 = vmax.f32 %v1981, 0.0
  %v2073 = vmax.f32 %v2009, 0.0
  %v2074 = vmax.f32 %v2037, 0.0
  %v2075 = vmax.f32 %v2065, 0.0
  %v2076 = vmax.f32 %v1899, 0.0
  %v2077 = vmax.f32 %v1927, 0.0
  %v2078 = vmax.f32 %v1955, 0.0
  %v2079 = vmax.f32 %v1983, 0.0
  %v2080 = vmax.f32 %v2011, 0.0
  %v2081 = vmax.f32 %v2039, 0.0
  %v2082 = vmax.f32 %v2067, 0.0
  %v2083 = vpack.c.bf16 %v2070, %v2069
  %v2084 = vpack.c.bf16 %v2072, %v2071
  %v2085 = vpack.c.bf16 %v2074, %v2073
  %v2086 = vpack.c.bf16 %v2075, %v2075
  %v2087 = vpack.c.bf16 %v2077, %v2076
  %v2088 = vpack.c.bf16 %v2079, %v2078
  %v2089 = vpack.c.bf16 %v2081, %v2080
  %v2090 = vpack.c.bf16 %v2082, %v2082
  %2091 = vst [vmem:[%s9] sm:$0xff] %v2083
  %2092 = vst [vmem:[%s9 + $0x8] sm:$0xff] %v2084
  %2093 = vst [vmem:[%s9 + $0x10] sm:$0xff] %v2085
  %vm2094 = vcmask 125952
  %2095 = vst.msk [vmem:[%s9 + $0x18] sm:$0xf] %vm2094, %v2086
  %2096 = vst [vmem:[%s9 + $0x1c] sm:$0xff] %v2087
  %2097 = vst [vmem:[%s9 + $0x24] sm:$0xff] %v2088
  %2098 = vst [vmem:[%s9 + $0x2c] sm:$0xff] %v2089
  %2099 = vst.msk [vmem:[%s9 + $0x34] sm:$0xf] %vm2094, %v2090
  // Predicated region
  $region38: #{autoencoder_lin_forward.1} parent=0 // pred_check
    _
  $region39: #{autoencoder_lin_forward.1} parent=0 // pred_check_branch
    %2101 = sbr.rel (0) target = $region41
  $region40: #{autoencoder_lin_forward.1} parent=0 // pred_region
    _
  $region41: #{autoencoder_lin_forward.1} parent=0 // pred_fallthru
    _
  // Predicated region
  $region42: #{autoencoder_lin_forward.1} parent=0 // pred_check
    _
  $region43: #{autoencoder_lin_forward.1} parent=0 // pred_check_branch
    %2103 = sbr.rel (0) target = $region45
  $region44: #{autoencoder_lin_forward.1} parent=0 // pred_region
    _
  $region45: #{autoencoder_lin_forward.1} parent=0 // pred_fallthru
    _

</llo_original>
